<compile_context>
chip_gen: v6e
topology: v6e:2x2x1
jax: 0.10.0
libtpu: 0.0.40
codegen_flags: <defaults>
</compile_context>

<pallas_src>
import jax
import jax.numpy as jnp
from jax.experimental import pallas as pl
from jax.experimental.pallas import tpu as pltpu

D_IN = 32 * 32      # 1024
D_HID = 16 * 16     # 256
D_OUT = 32 * 32     # 1024

# Default batch tile: multiple of 128 (keeps the MXU rows full) and small
# enough that double-buffered f32 x/out tiles + resident weights fit easily
# within the 48 MiB VMEM budget on every TPU generation (v5e/v6e/v7x).
DEFAULT_TM = 512


def _round_up(n, m):
    return ((n + m - 1) // m) * m


def _custom_relu(x):
    # Exactly mirrors the PyTorch expression (x >= 0) * x + (x < 0) * 0,
    # including NaN propagation (0 * NaN = NaN).
    return (x >= 0).astype(x.dtype) * x


def mlp_kernel(x_ref, w1_ref, b1_ref, w2_ref, b2_ref, w3_ref, b3_ref, o_ref):
    x = x_ref[...]                                                  # (TM, 1024)
    h1 = jnp.dot(x, w1_ref[...], preferred_element_type=jnp.float32)
    h1 = _custom_relu(h1 + b1_ref[...])                             # (TM, 256)
    h2 = jnp.dot(h1, w2_ref[...], preferred_element_type=jnp.float32)
    h2 = _custom_relu(h2 + b2_ref[...])                             # (TM, 256)
    out = jnp.dot(h2, w3_ref[...], preferred_element_type=jnp.float32)
    o_ref[...] = (out + b3_ref[...]).astype(o_ref.dtype)            # (TM, 1024)


def non_linear_network(x, params, *, tm=DEFAULT_TM):
    """x: (B, 1, 32, 32) float32 -> (B, 1, 32, 32) float32."""
    w1, b1, w2, b2, w3, b3 = params
    batch = x.shape[0]
    x_flat = x.reshape(batch, D_IN)

    # Pick a batch tile: at most `tm`, at least the (8-aligned) padded batch
    # for tiny toy batches, then pad the batch to a tile multiple.
    b_pad8 = max(8, _round_up(batch, 8))
    tile_m = min(tm, b_pad8)
    b_padded = _round_up(batch, tile_m)
    if b_padded != batch:
        x_flat = jnp.pad(x_flat, ((0, b_padded - batch), (0, 0)))

    grid = (b_padded // tile_m,)

    weight_bytes = 4 * (D_IN * D_HID + D_HID
                        + D_HID * D_HID + D_HID
                        + D_HID * D_OUT + D_OUT)
    cost = pl.CostEstimate(
        flops=2 * b_padded * (D_IN * D_HID + D_HID * D_HID + D_HID * D_OUT),
        transcendentals=0,
        bytes_accessed=4 * b_padded * (D_IN + D_OUT) + weight_bytes,
    )

    def weight_spec(shape):
        # Constant index_map: weights/biases stay resident across grid steps.
        return pl.BlockSpec(shape, lambda i: (0, 0))

    out_flat = pl.pallas_call(
        mlp_kernel,
        out_shape=jax.ShapeDtypeStruct((b_padded, D_OUT), jnp.float32),
        grid=grid,
        in_specs=[
            pl.BlockSpec((tile_m, D_IN), lambda i: (i, 0)),
            weight_spec((D_IN, D_HID)), weight_spec((1, D_HID)),
            weight_spec((D_HID, D_HID)), weight_spec((1, D_HID)),
            weight_spec((D_HID, D_OUT)), weight_spec((1, D_OUT)),
        ],
        out_specs=pl.BlockSpec((tile_m, D_OUT), lambda i: (i, 0)),
        compiler_params=pltpu.CompilerParams(
            dimension_semantics=("parallel",),
            vmem_limit_bytes=48 << 20,   # headroom on v7x's 64 MiB VMEM
        ),
        cost_estimate=cost,
    )(x_flat, w1, b1, w2, b2, w3, b3)

    return out_flat[:batch].reshape(batch, 1, 32, 32)


def init_params(key):
    """Deterministic init mimicking PyTorch nn.Linear (uniform ±1/sqrt(fan_in)).
    Weights stored as [in, out] so the kernel does y = x @ W + b."""
    ks = jax.random.split(key, 6)

    def linear(kw, kb, fan_in, fan_out):
        bound = 1.0 / (fan_in ** 0.5)
        w = jax.random.uniform(kw, (fan_in, fan_out), jnp.float32, -bound, bound)
        b = jax.random.uniform(kb, (1, fan_out), jnp.float32, -bound, bound)
        return w, b

    w1, b1 = linear(ks[0], ks[1], D_IN, D_HID)
    w2, b2 = linear(ks[2], ks[3], D_HID, D_HID)
    w3, b3 = linear(ks[4], ks[5], D_HID, D_OUT)
    return (w1, b1, w2, b2, w3, b3)


if __name__ == "__main__":
    key = jax.random.PRNGKey(0)
    k_x, k_p = jax.random.split(key)

    batch = 8
    x = jax.random.normal(k_x, (batch, 1, 32, 32), dtype=jnp.float32)
    params = init_params(k_p)

    out = non_linear_network(x, params)
    jax.block_until_ready(out)

    # quick sanity check against plain-JAX reference
    w1, b1, w2, b2, w3, b3 = params
    xf = x.reshape(batch, D_IN)
    h1 = _custom_relu(xf @ w1 + b1)
    h2 = _custom_relu(h1 @ w2 + b2)
    ref = (h2 @ w3 + b3).reshape(batch, 1, 32, 32)
    assert out.shape == (batch, 1, 32, 32)
    assert jnp.allclose(out, ref, atol=1e-4, rtol=1e-4)

    # also exercise the batch-grid / padding path (batch not a tile multiple)
    batch2 = 20
    x2 = jax.random.normal(jax.random.PRNGKey(1), (batch2, 1, 32, 32), jnp.float32)
    out2 = non_linear_network(x2, params, tm=16)
    jax.block_until_ready(out2)
    xf2 = x2.reshape(batch2, D_IN)
    ref2 = (_custom_relu(_custom_relu(xf2 @ w1 + b1) @ w2 + b2) @ w3 + b3)
    assert jnp.allclose(out2, ref2.reshape(batch2, 1, 32, 32), atol=1e-4, rtol=1e-4)

    print("KERNEL_OK")
</pallas_src>

<mosaic_0001>
module attributes {stable_mosaic.version = 11 : i64} {
  func.func @mlp_kernel(%arg0: i32, %arg1: memref<8x1024xf32, #tpu.memory_space<vmem>>, %arg2: memref<1024x256xf32, #tpu.memory_space<vmem>>, %arg3: memref<1x256xf32, #tpu.memory_space<vmem>>, %arg4: memref<256x256xf32, #tpu.memory_space<vmem>>, %arg5: memref<1x256xf32, #tpu.memory_space<vmem>>, %arg6: memref<256x1024xf32, #tpu.memory_space<vmem>>, %arg7: memref<1x1024xf32, #tpu.memory_space<vmem>>, %arg8: memref<8x1024xf32, #tpu.memory_space<vmem>>) attributes {dimension_semantics = [#tpu.dimension_semantics<parallel>], iteration_bounds = array<i64: 1>, scalar_prefetch = 0 : i64, scratch_operands = 0 : i64, tpu.core_type = #tpu.core_type<tc>, window_params = [{transform_indices = @transform_0, window_bounds = array<i64: 8, 1024>}, {pipeline_mode = #tpu.pipeline_mode<synchronous>, transform_indices = @transform_1, window_bounds = array<i64: 1024, 256>}, {pipeline_mode = #tpu.pipeline_mode<synchronous>, transform_indices = @transform_2, window_bounds = array<i64: 1, 256>}, {pipeline_mode = #tpu.pipeline_mode<synchronous>, transform_indices = @transform_3, window_bounds = array<i64: 256, 256>}, {pipeline_mode = #tpu.pipeline_mode<synchronous>, transform_indices = @transform_4, window_bounds = array<i64: 1, 256>}, {pipeline_mode = #tpu.pipeline_mode<synchronous>, transform_indices = @transform_5, window_bounds = array<i64: 256, 1024>}, {pipeline_mode = #tpu.pipeline_mode<synchronous>, transform_indices = @transform_6, window_bounds = array<i64: 1, 1024>}, {transform_indices = @transform_7, window_bounds = array<i64: 8, 1024>}]} {
    %c0 = arith.constant 0 : index
    %c0_0 = arith.constant 0 : index
    %0 = vector.load %arg1[%c0, %c0_0] : memref<8x1024xf32, #tpu.memory_space<vmem>>, vector<8x1024xf32>
    %c0_1 = arith.constant 0 : index
    %c0_2 = arith.constant 0 : index
    %1 = vector.load %arg2[%c0_1, %c0_2] : memref<1024x256xf32, #tpu.memory_space<vmem>>, vector<1024x256xf32>
    %cst = arith.constant dense<0.000000e+00> : vector<8x256xf32>
    %2 = tpu.matmul %0, %1, %cst {dimension_numbers = #tpu.dot_dimension_numbers<[1], [0], [0], [1], [0, 0, 1, 1], [], []>} : vector<8x1024xf32>, vector<1024x256xf32>, vector<8x256xf32> -> vector<8x256xf32>
    %c0_3 = arith.constant 0 : index
    %c0_4 = arith.constant 0 : index
    %3 = vector.load %arg3[%c0_3, %c0_4] : memref<1x256xf32, #tpu.memory_space<vmem>>, vector<1x256xf32>
    %4 = vector.broadcast %3 : vector<1x256xf32> to vector<8x256xf32>
    %5 = arith.addf %2, %4 : vector<8x256xf32>
    %cst_5 = arith.constant 0.000000e+00 : f32
    %6 = vector.broadcast %cst_5 : f32 to vector<8x256xf32>
    %7 = arith.cmpf oge, %5, %6 : vector<8x256xf32>
    %8 = arith.extui %7 : vector<8x256xi1> to vector<8x256xi32>
    %9 = arith.sitofp %8 : vector<8x256xi32> to vector<8x256xf32>
    %10 = arith.mulf %9, %5 : vector<8x256xf32>
    %c0_6 = arith.constant 0 : index
    %c0_7 = arith.constant 0 : index
    %11 = vector.load %arg4[%c0_6, %c0_7] : memref<256x256xf32, #tpu.memory_space<vmem>>, vector<256x256xf32>
    %cst_8 = arith.constant dense<0.000000e+00> : vector<8x256xf32>
    %12 = tpu.matmul %10, %11, %cst_8 {dimension_numbers = #tpu.dot_dimension_numbers<[1], [0], [0], [1], [0, 0, 1, 1], [], []>} : vector<8x256xf32>, vector<256x256xf32>, vector<8x256xf32> -> vector<8x256xf32>
    %c0_9 = arith.constant 0 : index
    %c0_10 = arith.constant 0 : index
    %13 = vector.load %arg5[%c0_9, %c0_10] : memref<1x256xf32, #tpu.memory_space<vmem>>, vector<1x256xf32>
    %14 = vector.broadcast %13 : vector<1x256xf32> to vector<8x256xf32>
    %15 = arith.addf %12, %14 : vector<8x256xf32>
    %cst_11 = arith.constant 0.000000e+00 : f32
    %16 = vector.broadcast %cst_11 : f32 to vector<8x256xf32>
    %17 = arith.cmpf oge, %15, %16 : vector<8x256xf32>
    %18 = arith.extui %17 : vector<8x256xi1> to vector<8x256xi32>
    %19 = arith.sitofp %18 : vector<8x256xi32> to vector<8x256xf32>
    %20 = arith.mulf %19, %15 : vector<8x256xf32>
    %c0_12 = arith.constant 0 : index
    %c0_13 = arith.constant 0 : index
    %21 = vector.load %arg6[%c0_12, %c0_13] : memref<256x1024xf32, #tpu.memory_space<vmem>>, vector<256x1024xf32>
    %cst_14 = arith.constant dense<0.000000e+00> : vector<8x1024xf32>
    %22 = tpu.matmul %20, %21, %cst_14 {dimension_numbers = #tpu.dot_dimension_numbers<[1], [0], [0], [1], [0, 0, 1, 1], [], []>} : vector<8x256xf32>, vector<256x1024xf32>, vector<8x1024xf32> -> vector<8x1024xf32>
    %c0_15 = arith.constant 0 : index
    %c0_16 = arith.constant 0 : index
    %23 = vector.load %arg7[%c0_15, %c0_16] : memref<1x1024xf32, #tpu.memory_space<vmem>>, vector<1x1024xf32>
    %24 = vector.broadcast %23 : vector<1x1024xf32> to vector<8x1024xf32>
    %25 = arith.addf %22, %24 : vector<8x1024xf32>
    %c0_17 = arith.constant 0 : index
    %c0_18 = arith.constant 0 : index
    %26 = vector.load %arg8[%c0_17, %c0_18] : memref<8x1024xf32, #tpu.memory_space<vmem>>, vector<8x1024xf32>
    tpu.vector_store %arg8[%c0_17, %c0_18], %25 {strides = array<i32>} : memref<8x1024xf32, #tpu.memory_space<vmem>>, vector<8x1024xf32>,
    return
  }
  func.func @transform_0(%arg0: i32) -> (i32, i32) {
    %c0_i32 = arith.constant 0 : i32
    %c0_i32_0 = arith.constant 0 : i32
    return %arg0, %c0_i32 : i32, i32
  }
  func.func @transform_1(%arg0: i32) -> (i32, i32) {
    %c0_i32 = arith.constant 0 : i32
    %c0_i32_0 = arith.constant 0 : i32
    %c0_i32_1 = arith.constant 0 : i32
    return %c0_i32, %c0_i32_0 : i32, i32
  }
  func.func @transform_2(%arg0: i32) -> (i32, i32) {
    %c0_i32 = arith.constant 0 : i32
    %c0_i32_0 = arith.constant 0 : i32
    %c0_i32_1 = arith.constant 0 : i32
    return %c0_i32, %c0_i32_0 : i32, i32
  }
  func.func @transform_3(%arg0: i32) -> (i32, i32) {
    %c0_i32 = arith.constant 0 : i32
    %c0_i32_0 = arith.constant 0 : i32
    %c0_i32_1 = arith.constant 0 : i32
    return %c0_i32, %c0_i32_0 : i32, i32
  }
  func.func @transform_4(%arg0: i32) -> (i32, i32) {
    %c0_i32 = arith.constant 0 : i32
    %c0_i32_0 = arith.constant 0 : i32
    %c0_i32_1 = arith.constant 0 : i32
    return %c0_i32, %c0_i32_0 : i32, i32
  }
  func.func @transform_5(%arg0: i32) -> (i32, i32) {
    %c0_i32 = arith.constant 0 : i32
    %c0_i32_0 = arith.constant 0 : i32
    %c0_i32_1 = arith.constant 0 : i32
    return %c0_i32, %c0_i32_0 : i32, i32
  }
  func.func @transform_6(%arg0: i32) -> (i32, i32) {
    %c0_i32 = arith.constant 0 : i32
    %c0_i32_0 = arith.constant 0 : i32
    %c0_i32_1 = arith.constant 0 : i32
    return %c0_i32, %c0_i32_0 : i32, i32
  }
  func.func @transform_7(%arg0: i32) -> (i32, i32) {
    %c0_i32 = arith.constant 0 : i32
    %c0_i32_0 = arith.constant 0 : i32
    return %arg0, %c0_i32 : i32, i32
  }
}

</mosaic_0001>

<llo_original>
// kernel: tpu_custom_call.1
$region0: #{tpu_custom_call.1}
  #allocation0 [shape = 'u32[]', space=smem, size = 0x4, offset = 0x4, fixed_abs, tag = 'smem constant byte address 0x4 - core index']
  #allocation1 [shape = 'u32[144,128]{1,0:T(1,128)}', space=vmem, size = 0x12000, scoped, tag = 'internal scratch']
  %s0 = inlined_call_operand.hbm [shape: f32[8,1024], index: 0, kind: input, shape index: {}]
  %s1 = inlined_call_operand.hbm [shape: f32[1024,256], index: 1, kind: input, shape index: {}]
  %s2 = inlined_call_operand.vmem [shape: f32[1,256], index: 2, kind: input, shape index: {}]
  %s3 = inlined_call_operand.hbm [shape: f32[256,256], index: 3, kind: input, shape index: {}]
  %s4 = inlined_call_operand.hbm [shape: f32[1,256], index: 4, kind: input, shape index: {}]
  %s5 = inlined_call_operand.hbm [shape: f32[256,1024], index: 5, kind: input, shape index: {}]
  %s6 = inlined_call_operand.vmem [shape: f32[1,1024], index: 6, kind: input, shape index: {}]
  %s7 = inlined_call_operand.hbm [shape: f32[8,1024], index: 7, kind: output, shape index: {}]
  %s8 = sld [smem:[#allocation0]]
  $region58: #{tpu_custom_call.1} parent=0
    _
  %s10 = ssub.s32 1, %s8
  %s11 = scalar_select 0, %s10, %s8
  $region1: #{tpu_custom_call.1} parent=0
    #allocation2 [shape = 'u8[32768]{0}', space=vmem, size = 0x8000, scoped, tag = 'input window, operand 0, single buffered']
    #allocation3 [shape = 's32[1]{0}', space=sflag, size = 0x4, scoped, tag = 'scoped memory for tpu_custom_call.1']
    #allocation4 [shape = 's32[1]{0}', space=sflag, size = 0x4, scoped, tag = 'scoped memory for tpu_custom_call.1']
    #allocation5 [shape = 'u8[1048576]{0}', space=vmem, size = 0x100000, scoped, tag = 'input window, operand 1, single buffered']
    #allocation6 [shape = 's32[1]{0}', space=sflag, size = 0x4, scoped, tag = 'scoped memory for tpu_custom_call.1']
    #allocation7 [shape = 'u8[262144]{0}', space=vmem, size = 0x40000, scoped, tag = 'input window, operand 3, single buffered']
    #allocation8 [shape = 'u8[1024]{0}', space=vmem, size = 0x400, scoped, tag = 'input window, operand 4, single buffered']
    #allocation9 [shape = 's32[1]{0}', space=sflag, size = 0x4, scoped, tag = 'scoped memory for tpu_custom_call.1']
    #allocation10 [shape = 'u8[1048576]{0}', space=vmem, size = 0x100000, scoped, tag = 'input window, operand 5, single buffered']
    #allocation11 [shape = 'u8[32768]{0}', space=vmem, size = 0x8000, scoped, tag = 'output window, operand 0, single buffered']
    %12 = vsyncpa [#allocation3], 0
    %13 = vsyncpa [#allocation6], 0
    %14 = vsyncpa [#allocation9], 0
    %15 = vsyncpa [#allocation4], 0
    // Predicated region
    $region2: #{tpu_custom_call.1} parent=1 // pred_check
      _
    $region3: #{tpu_custom_call.1} parent=1 // pred_check_branch
      %17 = sbr.rel (0) target = $region5
    $region4: #{tpu_custom_call.1} parent=1 // pred_region
      %s19 = ssub.s32 1024, 1024
      %20 = vsyncadd [#allocation3], %s19
      %s22 = sshll.u32 [#allocation2], 4
      %s23 = int_to_ptr.vmem [resolvable:$true] %s22
      %25 = dma.hbm_to_vmem [thread:$0]  %s0, 1024, %s23, [#allocation3]
    $region5: #{tpu_custom_call.1} parent=1 // pred_fallthru
      _
    // Predicated region
    $region6: #{tpu_custom_call.1} parent=1 // pred_check
      _
    $region7: #{tpu_custom_call.1} parent=1 // pred_check_branch
      %27 = sbr.rel (0) target = $region9
    $region8: #{tpu_custom_call.1} parent=1 // pred_region
      %s29 = ssub.s32 32768, 32768
      %30 = vsyncadd [#allocation6], %s29
      %s31 = sshll.u32 [#allocation5], 4
      %s32 = int_to_ptr.vmem [resolvable:$true] %s31
      %37 = dma.hbm_to_vmem [thread:$0]  %s1, 32768, %s32, [#allocation6], 256, 256, 16
    $region9: #{tpu_custom_call.1} parent=1 // pred_fallthru
      _
    // Predicated region
    $region10: #{tpu_custom_call.1} parent=1 // pred_check
      _
    $region11: #{tpu_custom_call.1} parent=1 // pred_check_branch
      %39 = sbr.rel (0) target = $region13
    $region12: #{tpu_custom_call.1} parent=1 // pred_region
      _
    $region13: #{tpu_custom_call.1} parent=1 // pred_fallthru
      _
    // Predicated region
    $region14: #{tpu_custom_call.1} parent=1 // pred_check
      _
    $region15: #{tpu_custom_call.1} parent=1 // pred_check_branch
      %41 = sbr.rel (0) target = $region17
    $region16: #{tpu_custom_call.1} parent=1 // pred_region
      %s43 = ssub.s32 8192, 8192
      %44 = vsyncadd [#allocation6], %s43
      %s45 = sshll.u32 [#allocation7], 4
      %s46 = int_to_ptr.vmem [resolvable:$true] %s45
      %51 = dma.hbm_to_vmem [thread:$0]  %s3, 8192, %s46, [#allocation6], 256, 256, 16
    $region17: #{tpu_custom_call.1} parent=1 // pred_fallthru
      _
    // Predicated region
    $region18: #{tpu_custom_call.1} parent=1 // pred_check
      _
    $region19: #{tpu_custom_call.1} parent=1 // pred_check_branch
      %53 = sbr.rel (0) target = $region21
    $region20: #{tpu_custom_call.1} parent=1 // pred_region
      %s55 = ssub.s32 32, 32
      %56 = vsyncadd [#allocation9], %s55
      %s58 = sshll.u32 [#allocation8], 4
      %s59 = int_to_ptr.vmem [resolvable:$true] %s58
      %61 = dma.hbm_to_vmem [thread:$0]  %s4, 32, %s59, [#allocation9]
    $region21: #{tpu_custom_call.1} parent=1 // pred_fallthru
      _
    // Predicated region
    $region22: #{tpu_custom_call.1} parent=1 // pred_check
      _
    $region23: #{tpu_custom_call.1} parent=1 // pred_check_branch
      %63 = sbr.rel (0) target = $region25
    $region24: #{tpu_custom_call.1} parent=1 // pred_region
      %s65 = ssub.s32 32768, 32768
      %66 = vsyncadd [#allocation9], %s65
      %s67 = sshll.u32 [#allocation10], 4
      %s68 = int_to_ptr.vmem [resolvable:$true] %s67
      %73 = dma.hbm_to_vmem [thread:$0]  %s5, 32768, %s68, [#allocation9], 1024, 1024, 64
    $region25: #{tpu_custom_call.1} parent=1 // pred_fallthru
      _
    // Predicated region
    $region26: #{tpu_custom_call.1} parent=1 // pred_check
      _
    $region27: #{tpu_custom_call.1} parent=1 // pred_check_branch
      %75 = sbr.rel (0) target = $region29
    $region28: #{tpu_custom_call.1} parent=1 // pred_region
      _
    $region29: #{tpu_custom_call.1} parent=1 // pred_fallthru
      _
    // Predicated region
    $region30: #{tpu_custom_call.1} parent=1 // pred_check
      _
    $region31: #{tpu_custom_call.1} parent=1 // pred_check_branch
      %77 = sbr.rel (0) target = $region33
    $region32: #{tpu_custom_call.1} parent=1 // pred_region
      %78 = dma.done [#allocation3], 1024
    $region33: #{tpu_custom_call.1} parent=1 // pred_fallthru
      _
    // Predicated region
    $region34: #{tpu_custom_call.1} parent=1 // pred_check
      _
    $region35: #{tpu_custom_call.1} parent=1 // pred_check_branch
      %80 = sbr.rel (0) target = $region37
    $region36: #{tpu_custom_call.1} parent=1 // pred_region
      %81 = dma.done [#allocation6], 32768
    $region37: #{tpu_custom_call.1} parent=1 // pred_fallthru
      _
    // Predicated region
    $region38: #{tpu_custom_call.1} parent=1 // pred_check
      _
    $region39: #{tpu_custom_call.1} parent=1 // pred_check_branch
      %83 = sbr.rel (0) target = $region41
    $region40: #{tpu_custom_call.1} parent=1 // pred_region
      %84 = dma.done [#allocation6], 8192
    $region41: #{tpu_custom_call.1} parent=1 // pred_fallthru
      _
    // Predicated region
    $region42: #{tpu_custom_call.1} parent=1 // pred_check
      _
    $region43: #{tpu_custom_call.1} parent=1 // pred_check_branch
      %86 = sbr.rel (0) target = $region45
    $region44: #{tpu_custom_call.1} parent=1 // pred_region
      %87 = dma.done [#allocation9], 32
    $region45: #{tpu_custom_call.1} parent=1 // pred_fallthru
      _
    // Predicated region
    $region46: #{tpu_custom_call.1} parent=1 // pred_check
      _
    $region47: #{tpu_custom_call.1} parent=1 // pred_check_branch
      %89 = sbr.rel (0) target = $region49
    $region48: #{tpu_custom_call.1} parent=1 // pred_region
      %90 = dma.done [#allocation9], 32768
    $region49: #{tpu_custom_call.1} parent=1 // pred_fallthru
      _
    %v91 = vld [vmem:[#allocation2] sm:$0xff]
    %v92 = vld [vmem:[#allocation2 + $0x8] sm:$0xff]
    %v93 = vld [vmem:[#allocation2 + $0x10] sm:$0xff]
    %v94 = vld [vmem:[#allocation2 + $0x18] sm:$0xff]
    %v95 = vld [vmem:[#allocation2 + $0x20] sm:$0xff]
    %v96 = vld [vmem:[#allocation2 + $0x28] sm:$0xff]
    %v97 = vld [vmem:[#allocation2 + $0x30] sm:$0xff]
    %v98 = vld [vmem:[#allocation2 + $0x38] sm:$0xff]
    %v99 = vld [vmem:[#allocation5] sm:$0xff]
    %v100 = vld [vmem:[#allocation5 + $0x8] sm:$0xff]
    %v101 = vld [vmem:[#allocation5 + $0x10] sm:$0xff]
    %v102 = vld [vmem:[#allocation5 + $0x18] sm:$0xff]
    %v103 = vld [vmem:[#allocation5 + $0x20] sm:$0xff]
    %v104 = vld [vmem:[#allocation5 + $0x28] sm:$0xff]
    %v105 = vld [vmem:[#allocation5 + $0x30] sm:$0xff]
    %v106 = vld [vmem:[#allocation5 + $0x38] sm:$0xff]
    %v107 = vld [vmem:[#allocation5 + $0x40] sm:$0xff]
    %v108 = vld [vmem:[#allocation5 + $0x48] sm:$0xff]
    %v109 = vld [vmem:[#allocation5 + $0x50] sm:$0xff]
    %v110 = vld [vmem:[#allocation5 + $0x58] sm:$0xff]
    %v111 = vld [vmem:[#allocation5 + $0x60] sm:$0xff]
    %v112 = vld [vmem:[#allocation5 + $0x68] sm:$0xff]
    %v113 = vld [vmem:[#allocation5 + $0x70] sm:$0xff]
    %v114 = vld [vmem:[#allocation5 + $0x78] sm:$0xff]
    %v115 = vld [vmem:[#allocation5 + $0x80] sm:$0xff]
    %v116 = vld [vmem:[#allocation5 + $0x88] sm:$0xff]
    %v117 = vld [vmem:[#allocation5 + $0x90] sm:$0xff]
    %v118 = vld [vmem:[#allocation5 + $0x98] sm:$0xff]
    %v119 = vld [vmem:[#allocation5 + $0xa0] sm:$0xff]
    %v120 = vld [vmem:[#allocation5 + $0xa8] sm:$0xff]
    %v121 = vld [vmem:[#allocation5 + $0xb0] sm:$0xff]
    %v122 = vld [vmem:[#allocation5 + $0xb8] sm:$0xff]
    %v123 = vld [vmem:[#allocation5 + $0xc0] sm:$0xff]
    %v124 = vld [vmem:[#allocation5 + $0xc8] sm:$0xff]
    %v125 = vld [vmem:[#allocation5 + $0xd0] sm:$0xff]
    %v126 = vld [vmem:[#allocation5 + $0xd8] sm:$0xff]
    %v127 = vld [vmem:[#allocation5 + $0xe0] sm:$0xff]
    %v128 = vld [vmem:[#allocation5 + $0xe8] sm:$0xff]
    %v129 = vld [vmem:[#allocation5 + $0xf0] sm:$0xff]
    %v130 = vld [vmem:[#allocation5 + $0xf8] sm:$0xff]
    %v131 = vld [vmem:[#allocation5 + $0x100] sm:$0xff]
    %v132 = vld [vmem:[#allocation5 + $0x108] sm:$0xff]
    %v133 = vld [vmem:[#allocation5 + $0x110] sm:$0xff]
    %v134 = vld [vmem:[#allocation5 + $0x118] sm:$0xff]
    %v135 = vld [vmem:[#allocation5 + $0x120] sm:$0xff]
    %v136 = vld [vmem:[#allocation5 + $0x128] sm:$0xff]
    %v137 = vld [vmem:[#allocation5 + $0x130] sm:$0xff]
    %v138 = vld [vmem:[#allocation5 + $0x138] sm:$0xff]
    %v139 = vld [vmem:[#allocation5 + $0x140] sm:$0xff]
    %v140 = vld [vmem:[#allocation5 + $0x148] sm:$0xff]
    %v141 = vld [vmem:[#allocation5 + $0x150] sm:$0xff]
    %v142 = vld [vmem:[#allocation5 + $0x158] sm:$0xff]
    %v143 = vld [vmem:[#allocation5 + $0x160] sm:$0xff]
    %v144 = vld [vmem:[#allocation5 + $0x168] sm:$0xff]
    %v145 = vld [vmem:[#allocation5 + $0x170] sm:$0xff]
    %v146 = vld [vmem:[#allocation5 + $0x178] sm:$0xff]
    %v147 = vld [vmem:[#allocation5 + $0x180] sm:$0xff]
    %v148 = vld [vmem:[#allocation5 + $0x188] sm:$0xff]
    %v149 = vld [vmem:[#allocation5 + $0x190] sm:$0xff]
    %v150 = vld [vmem:[#allocation5 + $0x198] sm:$0xff]
    %v151 = vld [vmem:[#allocation5 + $0x1a0] sm:$0xff]
    %v152 = vld [vmem:[#allocation5 + $0x1a8] sm:$0xff]
    %v153 = vld [vmem:[#allocation5 + $0x1b0] sm:$0xff]
    %v154 = vld [vmem:[#allocation5 + $0x1b8] sm:$0xff]
    %v155 = vld [vmem:[#allocation5 + $0x1c0] sm:$0xff]
    %v156 = vld [vmem:[#allocation5 + $0x1c8] sm:$0xff]
    %v157 = vld [vmem:[#allocation5 + $0x1d0] sm:$0xff]
    %v158 = vld [vmem:[#allocation5 + $0x1d8] sm:$0xff]
    %v159 = vld [vmem:[#allocation5 + $0x1e0] sm:$0xff]
    %v160 = vld [vmem:[#allocation5 + $0x1e8] sm:$0xff]
    %v161 = vld [vmem:[#allocation5 + $0x1f0] sm:$0xff]
    %v162 = vld [vmem:[#allocation5 + $0x1f8] sm:$0xff]
    %v163 = vld [vmem:[#allocation5 + $0x200] sm:$0xff]
    %v164 = vld [vmem:[#allocation5 + $0x208] sm:$0xff]
    %v165 = vld [vmem:[#allocation5 + $0x210] sm:$0xff]
    %v166 = vld [vmem:[#allocation5 + $0x218] sm:$0xff]
    %v167 = vld [vmem:[#allocation5 + $0x220] sm:$0xff]
    %v168 = vld [vmem:[#allocation5 + $0x228] sm:$0xff]
    %v169 = vld [vmem:[#allocation5 + $0x230] sm:$0xff]
    %v170 = vld [vmem:[#allocation5 + $0x238] sm:$0xff]
    %v171 = vld [vmem:[#allocation5 + $0x240] sm:$0xff]
    %v172 = vld [vmem:[#allocation5 + $0x248] sm:$0xff]
    %v173 = vld [vmem:[#allocation5 + $0x250] sm:$0xff]
    %v174 = vld [vmem:[#allocation5 + $0x258] sm:$0xff]
    %v175 = vld [vmem:[#allocation5 + $0x260] sm:$0xff]
    %v176 = vld [vmem:[#allocation5 + $0x268] sm:$0xff]
    %v177 = vld [vmem:[#allocation5 + $0x270] sm:$0xff]
    %v178 = vld [vmem:[#allocation5 + $0x278] sm:$0xff]
    %v179 = vld [vmem:[#allocation5 + $0x280] sm:$0xff]
    %v180 = vld [vmem:[#allocation5 + $0x288] sm:$0xff]
    %v181 = vld [vmem:[#allocation5 + $0x290] sm:$0xff]
    %v182 = vld [vmem:[#allocation5 + $0x298] sm:$0xff]
    %v183 = vld [vmem:[#allocation5 + $0x2a0] sm:$0xff]
    %v184 = vld [vmem:[#allocation5 + $0x2a8] sm:$0xff]
    %v185 = vld [vmem:[#allocation5 + $0x2b0] sm:$0xff]
    %v186 = vld [vmem:[#allocation5 + $0x2b8] sm:$0xff]
    %v187 = vld [vmem:[#allocation5 + $0x2c0] sm:$0xff]
    %v188 = vld [vmem:[#allocation5 + $0x2c8] sm:$0xff]
    %v189 = vld [vmem:[#allocation5 + $0x2d0] sm:$0xff]
    %v190 = vld [vmem:[#allocation5 + $0x2d8] sm:$0xff]
    %v191 = vld [vmem:[#allocation5 + $0x2e0] sm:$0xff]
    %v192 = vld [vmem:[#allocation5 + $0x2e8] sm:$0xff]
    %v193 = vld [vmem:[#allocation5 + $0x2f0] sm:$0xff]
    %v194 = vld [vmem:[#allocation5 + $0x2f8] sm:$0xff]
    %v195 = vld [vmem:[#allocation5 + $0x300] sm:$0xff]
    %v196 = vld [vmem:[#allocation5 + $0x308] sm:$0xff]
    %v197 = vld [vmem:[#allocation5 + $0x310] sm:$0xff]
    %v198 = vld [vmem:[#allocation5 + $0x318] sm:$0xff]
    %v199 = vld [vmem:[#allocation5 + $0x320] sm:$0xff]
    %v200 = vld [vmem:[#allocation5 + $0x328] sm:$0xff]
    %v201 = vld [vmem:[#allocation5 + $0x330] sm:$0xff]
    %v202 = vld [vmem:[#allocation5 + $0x338] sm:$0xff]
    %v203 = vld [vmem:[#allocation5 + $0x340] sm:$0xff]
    %v204 = vld [vmem:[#allocation5 + $0x348] sm:$0xff]
    %v205 = vld [vmem:[#allocation5 + $0x350] sm:$0xff]
    %v206 = vld [vmem:[#allocation5 + $0x358] sm:$0xff]
    %v207 = vld [vmem:[#allocation5 + $0x360] sm:$0xff]
    %v208 = vld [vmem:[#allocation5 + $0x368] sm:$0xff]
    %v209 = vld [vmem:[#allocation5 + $0x370] sm:$0xff]
    %v210 = vld [vmem:[#allocation5 + $0x378] sm:$0xff]
    %v211 = vld [vmem:[#allocation5 + $0x380] sm:$0xff]
    %v212 = vld [vmem:[#allocation5 + $0x388] sm:$0xff]
    %v213 = vld [vmem:[#allocation5 + $0x390] sm:$0xff]
    %v214 = vld [vmem:[#allocation5 + $0x398] sm:$0xff]
    %v215 = vld [vmem:[#allocation5 + $0x3a0] sm:$0xff]
    %v216 = vld [vmem:[#allocation5 + $0x3a8] sm:$0xff]
    %v217 = vld [vmem:[#allocation5 + $0x3b0] sm:$0xff]
    %v218 = vld [vmem:[#allocation5 + $0x3b8] sm:$0xff]
    %v219 = vld [vmem:[#allocation5 + $0x3c0] sm:$0xff]
    %v220 = vld [vmem:[#allocation5 + $0x3c8] sm:$0xff]
    %v221 = vld [vmem:[#allocation5 + $0x3d0] sm:$0xff]
    %v222 = vld [vmem:[#allocation5 + $0x3d8] sm:$0xff]
    %v223 = vld [vmem:[#allocation5 + $0x3e0] sm:$0xff]
    %v224 = vld [vmem:[#allocation5 + $0x3e8] sm:$0xff]
    %v225 = vld [vmem:[#allocation5 + $0x3f0] sm:$0xff]
    %v226 = vld [vmem:[#allocation5 + $0x3f8] sm:$0xff]
    %v227 = vld [vmem:[#allocation5 + $0x400] sm:$0xff]
    %v228 = vld [vmem:[#allocation5 + $0x408] sm:$0xff]
    %v229 = vld [vmem:[#allocation5 + $0x410] sm:$0xff]
    %v230 = vld [vmem:[#allocation5 + $0x418] sm:$0xff]
    %v231 = vld [vmem:[#allocation5 + $0x420] sm:$0xff]
    %v232 = vld [vmem:[#allocation5 + $0x428] sm:$0xff]
    %v233 = vld [vmem:[#allocation5 + $0x430] sm:$0xff]
    %v234 = vld [vmem:[#allocation5 + $0x438] sm:$0xff]
    %v235 = vld [vmem:[#allocation5 + $0x440] sm:$0xff]
    %v236 = vld [vmem:[#allocation5 + $0x448] sm:$0xff]
    %v237 = vld [vmem:[#allocation5 + $0x450] sm:$0xff]
    %v238 = vld [vmem:[#allocation5 + $0x458] sm:$0xff]
    %v239 = vld [vmem:[#allocation5 + $0x460] sm:$0xff]
    %v240 = vld [vmem:[#allocation5 + $0x468] sm:$0xff]
    %v241 = vld [vmem:[#allocation5 + $0x470] sm:$0xff]
    %v242 = vld [vmem:[#allocation5 + $0x478] sm:$0xff]
    %v243 = vld [vmem:[#allocation5 + $0x480] sm:$0xff]
    %v244 = vld [vmem:[#allocation5 + $0x488] sm:$0xff]
    %v245 = vld [vmem:[#allocation5 + $0x490] sm:$0xff]
    %v246 = vld [vmem:[#allocation5 + $0x498] sm:$0xff]
    %v247 = vld [vmem:[#allocation5 + $0x4a0] sm:$0xff]
    %v248 = vld [vmem:[#allocation5 + $0x4a8] sm:$0xff]
    %v249 = vld [vmem:[#allocation5 + $0x4b0] sm:$0xff]
    %v250 = vld [vmem:[#allocation5 + $0x4b8] sm:$0xff]
    %v251 = vld [vmem:[#allocation5 + $0x4c0] sm:$0xff]
    %v252 = vld [vmem:[#allocation5 + $0x4c8] sm:$0xff]
    %v253 = vld [vmem:[#allocation5 + $0x4d0] sm:$0xff]
    %v254 = vld [vmem:[#allocation5 + $0x4d8] sm:$0xff]
    %v255 = vld [vmem:[#allocation5 + $0x4e0] sm:$0xff]
    %v256 = vld [vmem:[#allocation5 + $0x4e8] sm:$0xff]
    %v257 = vld [vmem:[#allocation5 + $0x4f0] sm:$0xff]
    %v258 = vld [vmem:[#allocation5 + $0x4f8] sm:$0xff]
    %v259 = vld [vmem:[#allocation5 + $0x500] sm:$0xff]
    %v260 = vld [vmem:[#allocation5 + $0x508] sm:$0xff]
    %v261 = vld [vmem:[#allocation5 + $0x510] sm:$0xff]
    %v262 = vld [vmem:[#allocation5 + $0x518] sm:$0xff]
    %v263 = vld [vmem:[#allocation5 + $0x520] sm:$0xff]
    %v264 = vld [vmem:[#allocation5 + $0x528] sm:$0xff]
    %v265 = vld [vmem:[#allocation5 + $0x530] sm:$0xff]
    %v266 = vld [vmem:[#allocation5 + $0x538] sm:$0xff]
    %v267 = vld [vmem:[#allocation5 + $0x540] sm:$0xff]
    %v268 = vld [vmem:[#allocation5 + $0x548] sm:$0xff]
    %v269 = vld [vmem:[#allocation5 + $0x550] sm:$0xff]
    %v270 = vld [vmem:[#allocation5 + $0x558] sm:$0xff]
    %v271 = vld [vmem:[#allocation5 + $0x560] sm:$0xff]
    %v272 = vld [vmem:[#allocation5 + $0x568] sm:$0xff]
    %v273 = vld [vmem:[#allocation5 + $0x570] sm:$0xff]
    %v274 = vld [vmem:[#allocation5 + $0x578] sm:$0xff]
    %v275 = vld [vmem:[#allocation5 + $0x580] sm:$0xff]
    %v276 = vld [vmem:[#allocation5 + $0x588] sm:$0xff]
    %v277 = vld [vmem:[#allocation5 + $0x590] sm:$0xff]
    %v278 = vld [vmem:[#allocation5 + $0x598] sm:$0xff]
    %v279 = vld [vmem:[#allocation5 + $0x5a0] sm:$0xff]
    %v280 = vld [vmem:[#allocation5 + $0x5a8] sm:$0xff]
    %v281 = vld [vmem:[#allocation5 + $0x5b0] sm:$0xff]
    %v282 = vld [vmem:[#allocation5 + $0x5b8] sm:$0xff]
    %v283 = vld [vmem:[#allocation5 + $0x5c0] sm:$0xff]
    %v284 = vld [vmem:[#allocation5 + $0x5c8] sm:$0xff]
    %v285 = vld [vmem:[#allocation5 + $0x5d0] sm:$0xff]
    %v286 = vld [vmem:[#allocation5 + $0x5d8] sm:$0xff]
    %v287 = vld [vmem:[#allocation5 + $0x5e0] sm:$0xff]
    %v288 = vld [vmem:[#allocation5 + $0x5e8] sm:$0xff]
    %v289 = vld [vmem:[#allocation5 + $0x5f0] sm:$0xff]
    %v290 = vld [vmem:[#allocation5 + $0x5f8] sm:$0xff]
    %v291 = vld [vmem:[#allocation5 + $0x600] sm:$0xff]
    %v292 = vld [vmem:[#allocation5 + $0x608] sm:$0xff]
    %v293 = vld [vmem:[#allocation5 + $0x610] sm:$0xff]
    %v294 = vld [vmem:[#allocation5 + $0x618] sm:$0xff]
    %v295 = vld [vmem:[#allocation5 + $0x620] sm:$0xff]
    %v296 = vld [vmem:[#allocation5 + $0x628] sm:$0xff]
    %v297 = vld [vmem:[#allocation5 + $0x630] sm:$0xff]
    %v298 = vld [vmem:[#allocation5 + $0x638] sm:$0xff]
    %v299 = vld [vmem:[#allocation5 + $0x640] sm:$0xff]
    %v300 = vld [vmem:[#allocation5 + $0x648] sm:$0xff]
    %v301 = vld [vmem:[#allocation5 + $0x650] sm:$0xff]
    %v302 = vld [vmem:[#allocation5 + $0x658] sm:$0xff]
    %v303 = vld [vmem:[#allocation5 + $0x660] sm:$0xff]
    %v304 = vld [vmem:[#allocation5 + $0x668] sm:$0xff]
    %v305 = vld [vmem:[#allocation5 + $0x670] sm:$0xff]
    %v306 = vld [vmem:[#allocation5 + $0x678] sm:$0xff]
    %v307 = vld [vmem:[#allocation5 + $0x680] sm:$0xff]
    %v308 = vld [vmem:[#allocation5 + $0x688] sm:$0xff]
    %v309 = vld [vmem:[#allocation5 + $0x690] sm:$0xff]
    %v310 = vld [vmem:[#allocation5 + $0x698] sm:$0xff]
    %v311 = vld [vmem:[#allocation5 + $0x6a0] sm:$0xff]
    %v312 = vld [vmem:[#allocation5 + $0x6a8] sm:$0xff]
    %v313 = vld [vmem:[#allocation5 + $0x6b0] sm:$0xff]
    %v314 = vld [vmem:[#allocation5 + $0x6b8] sm:$0xff]
    %v315 = vld [vmem:[#allocation5 + $0x6c0] sm:$0xff]
    %v316 = vld [vmem:[#allocation5 + $0x6c8] sm:$0xff]
    %v317 = vld [vmem:[#allocation5 + $0x6d0] sm:$0xff]
    %v318 = vld [vmem:[#allocation5 + $0x6d8] sm:$0xff]
    %v319 = vld [vmem:[#allocation5 + $0x6e0] sm:$0xff]
    %v320 = vld [vmem:[#allocation5 + $0x6e8] sm:$0xff]
    %v321 = vld [vmem:[#allocation5 + $0x6f0] sm:$0xff]
    %v322 = vld [vmem:[#allocation5 + $0x6f8] sm:$0xff]
    %v323 = vld [vmem:[#allocation5 + $0x700] sm:$0xff]
    %v324 = vld [vmem:[#allocation5 + $0x708] sm:$0xff]
    %v325 = vld [vmem:[#allocation5 + $0x710] sm:$0xff]
    %v326 = vld [vmem:[#allocation5 + $0x718] sm:$0xff]
    %v327 = vld [vmem:[#allocation5 + $0x720] sm:$0xff]
    %v328 = vld [vmem:[#allocation5 + $0x728] sm:$0xff]
    %v329 = vld [vmem:[#allocation5 + $0x730] sm:$0xff]
    %v330 = vld [vmem:[#allocation5 + $0x738] sm:$0xff]
    %v331 = vld [vmem:[#allocation5 + $0x740] sm:$0xff]
    %v332 = vld [vmem:[#allocation5 + $0x748] sm:$0xff]
    %v333 = vld [vmem:[#allocation5 + $0x750] sm:$0xff]
    %v334 = vld [vmem:[#allocation5 + $0x758] sm:$0xff]
    %v335 = vld [vmem:[#allocation5 + $0x760] sm:$0xff]
    %v336 = vld [vmem:[#allocation5 + $0x768] sm:$0xff]
    %v337 = vld [vmem:[#allocation5 + $0x770] sm:$0xff]
    %v338 = vld [vmem:[#allocation5 + $0x778] sm:$0xff]
    %v339 = vld [vmem:[#allocation5 + $0x780] sm:$0xff]
    %v340 = vld [vmem:[#allocation5 + $0x788] sm:$0xff]
    %v341 = vld [vmem:[#allocation5 + $0x790] sm:$0xff]
    %v342 = vld [vmem:[#allocation5 + $0x798] sm:$0xff]
    %v343 = vld [vmem:[#allocation5 + $0x7a0] sm:$0xff]
    %v344 = vld [vmem:[#allocation5 + $0x7a8] sm:$0xff]
    %v345 = vld [vmem:[#allocation5 + $0x7b0] sm:$0xff]
    %v346 = vld [vmem:[#allocation5 + $0x7b8] sm:$0xff]
    %v347 = vld [vmem:[#allocation5 + $0x7c0] sm:$0xff]
    %v348 = vld [vmem:[#allocation5 + $0x7c8] sm:$0xff]
    %v349 = vld [vmem:[#allocation5 + $0x7d0] sm:$0xff]
    %v350 = vld [vmem:[#allocation5 + $0x7d8] sm:$0xff]
    %v351 = vld [vmem:[#allocation5 + $0x7e0] sm:$0xff]
    %v352 = vld [vmem:[#allocation5 + $0x7e8] sm:$0xff]
    %v353 = vld [vmem:[#allocation5 + $0x7f0] sm:$0xff]
    %v354 = vld [vmem:[#allocation5 + $0x7f8] sm:$0xff]
    %v355 = vld [vmem:[%s2] sm:$0x3]
    %v357 = vlaneseq
    %v358 = vshrl.u32 %v357, 7
    %v359 = vsub.s32 0, %v358
    %v360 = vrot.slane %v355, %v359
    %v361 = vlaneseq
    %v362 = vshrl.u32 %v361, 7
    %v363 = vsub.s32 1, %v362
    %v364 = vrot.slane %v355, %v363
    %367 = vmatprep.subr.mxu0 %v130
    %368 = vmatpush1.msra.mxu0 %v129
    %369 = vmatprep.subr.mxu0 %v128
    %370 = vmatpush1.msra.mxu0 %v127
    %371 = vmatprep.subr.mxu0 %v126
    %372 = vmatpush1.msra.mxu0 %v125
    %373 = vmatprep.subr.mxu0 %v124
    %374 = vmatpush1.msra.mxu0 %v123
    %375 = vmatprep.subr.mxu0 %v122
    %376 = vmatpush1.msra.mxu0 %v121
    %377 = vmatprep.subr.mxu0 %v120
    %378 = vmatpush1.msra.mxu0 %v119
    %379 = vmatprep.subr.mxu0 %v118
    %380 = vmatpush1.msra.mxu0 %v117
    %381 = vmatprep.subr.mxu0 %v116
    %382 = vmatpush1.msra.mxu0 %v115
    %383 = vmatprep.subr.mxu0 %v114
    %384 = vmatpush1.msra.mxu0 %v113
    %385 = vmatprep.subr.mxu0 %v112
    %386 = vmatpush1.msra.mxu0 %v111
    %387 = vmatprep.subr.mxu0 %v110
    %388 = vmatpush1.msra.mxu0 %v109
    %389 = vmatprep.subr.mxu0 %v108
    %390 = vmatpush1.msra.mxu0 %v107
    %391 = vmatprep.subr.mxu0 %v106
    %392 = vmatpush1.msra.mxu0 %v105
    %393 = vmatprep.subr.mxu0 %v104
    %394 = vmatpush1.msra.mxu0 %v103
    %395 = vmatprep.subr.mxu0 %v102
    %396 = vmatpush1.msra.mxu0 %v101
    %397 = vmatprep.subr.mxu0 %v100
    %398 = vmatpush1.msra.mxu0 %v99
    %399 = vmatprep.subr.mxu0 %v162
    %400 = vmatpush2.msra.mxu0 %v161
    %401 = vmatprep.subr.mxu0 %v160
    %402 = vmatpush2.msra.mxu0 %v159
    %403 = vmatprep.subr.mxu0 %v158
    %404 = vmatpush2.msra.mxu0 %v157
    %405 = vmatprep.subr.mxu0 %v156
    %406 = vmatpush2.msra.mxu0 %v155
    %407 = vmatprep.subr.mxu0 %v154
    %408 = vmatpush2.msra.mxu0 %v153
    %409 = vmatprep.subr.mxu0 %v152
    %410 = vmatpush2.msra.mxu0 %v151
    %411 = vmatprep.subr.mxu0 %v150
    %412 = vmatpush2.msra.mxu0 %v149
    %413 = vmatprep.subr.mxu0 %v148
    %414 = vmatpush2.msra.mxu0 %v147
    %415 = vmatprep.subr.mxu0 %v146
    %416 = vmatpush2.msra.mxu0 %v145
    %417 = vmatprep.subr.mxu0 %v144
    %418 = vmatpush2.msra.mxu0 %v143
    %419 = vmatprep.subr.mxu0 %v142
    %420 = vmatpush2.msra.mxu0 %v141
    %421 = vmatprep.subr.mxu0 %v140
    %422 = vmatpush2.msra.mxu0 %v139
    %423 = vmatprep.subr.mxu0 %v138
    %424 = vmatpush2.msra.mxu0 %v137
    %425 = vmatprep.subr.mxu0 %v136
    %426 = vmatpush2.msra.mxu0 %v135
    %427 = vmatprep.subr.mxu0 %v134
    %428 = vmatpush2.msra.mxu0 %v133
    %429 = vmatprep.subr.mxu0 %v132
    %430 = vmatpush2.msra.mxu0 %v131
    %431 = vmatprep.mubr.f32.mxu0 %v92
    %432 = vmatmul.mubr.f32.gmra.mxu0 %v91
    %v433 = vpop.f32.mrf.mxu0
    %v434 = vadd.f32 %v360, %v433
    %v435 = vpop.f32.mrf.mxu0
    %v436 = vadd.f32 %v364, %v435
    %437 = vdwg.mxu0
    %438 = vmatprep.subr.mxu0 %v194
    %439 = vmatpush1.msra.mxu0 %v193
    %440 = vmatprep.subr.mxu0 %v192
    %441 = vmatpush1.msra.mxu0 %v191
    %442 = vmatprep.subr.mxu0 %v190
    %443 = vmatpush1.msra.mxu0 %v189
    %444 = vmatprep.subr.mxu0 %v188
    %445 = vmatpush1.msra.mxu0 %v187
    %446 = vmatprep.subr.mxu0 %v186
    %447 = vmatpush1.msra.mxu0 %v185
    %448 = vmatprep.subr.mxu0 %v184
    %449 = vmatpush1.msra.mxu0 %v183
    %450 = vmatprep.subr.mxu0 %v182
    %451 = vmatpush1.msra.mxu0 %v181
    %452 = vmatprep.subr.mxu0 %v180
    %453 = vmatpush1.msra.mxu0 %v179
    %454 = vmatprep.subr.mxu0 %v178
    %455 = vmatpush1.msra.mxu0 %v177
    %456 = vmatprep.subr.mxu0 %v176
    %457 = vmatpush1.msra.mxu0 %v175
    %458 = vmatprep.subr.mxu0 %v174
    %459 = vmatpush1.msra.mxu0 %v173
    %460 = vmatprep.subr.mxu0 %v172
    %461 = vmatpush1.msra.mxu0 %v171
    %462 = vmatprep.subr.mxu0 %v170
    %463 = vmatpush1.msra.mxu0 %v169
    %464 = vmatprep.subr.mxu0 %v168
    %465 = vmatpush1.msra.mxu0 %v167
    %466 = vmatprep.subr.mxu0 %v166
    %467 = vmatpush1.msra.mxu0 %v165
    %468 = vmatprep.subr.mxu0 %v164
    %469 = vmatpush1.msra.mxu0 %v163
    %470 = vmatprep.subr.mxu0 %v226
    %471 = vmatpush2.msra.mxu0 %v225
    %472 = vmatprep.subr.mxu0 %v224
    %473 = vmatpush2.msra.mxu0 %v223
    %474 = vmatprep.subr.mxu0 %v222
    %475 = vmatpush2.msra.mxu0 %v221
    %476 = vmatprep.subr.mxu0 %v220
    %477 = vmatpush2.msra.mxu0 %v219
    %478 = vmatprep.subr.mxu0 %v218
    %479 = vmatpush2.msra.mxu0 %v217
    %480 = vmatprep.subr.mxu0 %v216
    %481 = vmatpush2.msra.mxu0 %v215
    %482 = vmatprep.subr.mxu0 %v214
    %483 = vmatpush2.msra.mxu0 %v213
    %484 = vmatprep.subr.mxu0 %v212
    %485 = vmatpush2.msra.mxu0 %v211
    %486 = vmatprep.subr.mxu0 %v210
    %487 = vmatpush2.msra.mxu0 %v209
    %488 = vmatprep.subr.mxu0 %v208
    %489 = vmatpush2.msra.mxu0 %v207
    %490 = vmatprep.subr.mxu0 %v206
    %491 = vmatpush2.msra.mxu0 %v205
    %492 = vmatprep.subr.mxu0 %v204
    %493 = vmatpush2.msra.mxu0 %v203
    %494 = vmatprep.subr.mxu0 %v202
    %495 = vmatpush2.msra.mxu0 %v201
    %496 = vmatprep.subr.mxu0 %v200
    %497 = vmatpush2.msra.mxu0 %v199
    %498 = vmatprep.subr.mxu0 %v198
    %499 = vmatpush2.msra.mxu0 %v197
    %500 = vmatprep.subr.mxu0 %v196
    %501 = vmatpush2.msra.mxu0 %v195
    %502 = vmatprep.mubr.f32.mxu0 %v94
    %503 = vmatmul.mubr.f32.gmra.mxu0 %v93
    %v504 = vpop.f32.mrf.mxu0
    %v505 = vadd.f32 %v434, %v504
    %v506 = vpop.f32.mrf.mxu0
    %v507 = vadd.f32 %v436, %v506
    %508 = vdwg.mxu0
    %509 = vmatprep.subr.mxu0 %v258
    %510 = vmatpush1.msra.mxu0 %v257
    %511 = vmatprep.subr.mxu0 %v256
    %512 = vmatpush1.msra.mxu0 %v255
    %513 = vmatprep.subr.mxu0 %v254
    %514 = vmatpush1.msra.mxu0 %v253
    %515 = vmatprep.subr.mxu0 %v252
    %516 = vmatpush1.msra.mxu0 %v251
    %517 = vmatprep.subr.mxu0 %v250
    %518 = vmatpush1.msra.mxu0 %v249
    %519 = vmatprep.subr.mxu0 %v248
    %520 = vmatpush1.msra.mxu0 %v247
    %521 = vmatprep.subr.mxu0 %v246
    %522 = vmatpush1.msra.mxu0 %v245
    %523 = vmatprep.subr.mxu0 %v244
    %524 = vmatpush1.msra.mxu0 %v243
    %525 = vmatprep.subr.mxu0 %v242
    %526 = vmatpush1.msra.mxu0 %v241
    %527 = vmatprep.subr.mxu0 %v240
    %528 = vmatpush1.msra.mxu0 %v239
    %529 = vmatprep.subr.mxu0 %v238
    %530 = vmatpush1.msra.mxu0 %v237
    %531 = vmatprep.subr.mxu0 %v236
    %532 = vmatpush1.msra.mxu0 %v235
    %533 = vmatprep.subr.mxu0 %v234
    %534 = vmatpush1.msra.mxu0 %v233
    %535 = vmatprep.subr.mxu0 %v232
    %536 = vmatpush1.msra.mxu0 %v231
    %537 = vmatprep.subr.mxu0 %v230
    %538 = vmatpush1.msra.mxu0 %v229
    %539 = vmatprep.subr.mxu0 %v228
    %540 = vmatpush1.msra.mxu0 %v227
    %541 = vmatprep.subr.mxu0 %v290
    %542 = vmatpush2.msra.mxu0 %v289
    %543 = vmatprep.subr.mxu0 %v288
    %544 = vmatpush2.msra.mxu0 %v287
    %545 = vmatprep.subr.mxu0 %v286
    %546 = vmatpush2.msra.mxu0 %v285
    %547 = vmatprep.subr.mxu0 %v284
    %548 = vmatpush2.msra.mxu0 %v283
    %549 = vmatprep.subr.mxu0 %v282
    %550 = vmatpush2.msra.mxu0 %v281
    %551 = vmatprep.subr.mxu0 %v280
    %552 = vmatpush2.msra.mxu0 %v279
    %553 = vmatprep.subr.mxu0 %v278
    %554 = vmatpush2.msra.mxu0 %v277
    %555 = vmatprep.subr.mxu0 %v276
    %556 = vmatpush2.msra.mxu0 %v275
    %557 = vmatprep.subr.mxu0 %v274
    %558 = vmatpush2.msra.mxu0 %v273
    %559 = vmatprep.subr.mxu0 %v272
    %560 = vmatpush2.msra.mxu0 %v271
    %561 = vmatprep.subr.mxu0 %v270
    %562 = vmatpush2.msra.mxu0 %v269
    %563 = vmatprep.subr.mxu0 %v268
    %564 = vmatpush2.msra.mxu0 %v267
    %565 = vmatprep.subr.mxu0 %v266
    %566 = vmatpush2.msra.mxu0 %v265
    %567 = vmatprep.subr.mxu0 %v264
    %568 = vmatpush2.msra.mxu0 %v263
    %569 = vmatprep.subr.mxu0 %v262
    %570 = vmatpush2.msra.mxu0 %v261
    %571 = vmatprep.subr.mxu0 %v260
    %572 = vmatpush2.msra.mxu0 %v259
    %573 = vmatprep.mubr.f32.mxu0 %v96
    %574 = vmatmul.mubr.f32.gmra.mxu0 %v95
    %v575 = vpop.f32.mrf.mxu0
    %v576 = vadd.f32 %v505, %v575
    %v577 = vpop.f32.mrf.mxu0
    %v578 = vadd.f32 %v507, %v577
    %579 = vdwg.mxu0
    %580 = vmatprep.subr.mxu0 %v322
    %581 = vmatpush1.msra.mxu0 %v321
    %582 = vmatprep.subr.mxu0 %v320
    %583 = vmatpush1.msra.mxu0 %v319
    %584 = vmatprep.subr.mxu0 %v318
    %585 = vmatpush1.msra.mxu0 %v317
    %586 = vmatprep.subr.mxu0 %v316
    %587 = vmatpush1.msra.mxu0 %v315
    %588 = vmatprep.subr.mxu0 %v314
    %589 = vmatpush1.msra.mxu0 %v313
    %590 = vmatprep.subr.mxu0 %v312
    %591 = vmatpush1.msra.mxu0 %v311
    %592 = vmatprep.subr.mxu0 %v310
    %593 = vmatpush1.msra.mxu0 %v309
    %594 = vmatprep.subr.mxu0 %v308
    %595 = vmatpush1.msra.mxu0 %v307
    %596 = vmatprep.subr.mxu0 %v306
    %597 = vmatpush1.msra.mxu0 %v305
    %598 = vmatprep.subr.mxu0 %v304
    %599 = vmatpush1.msra.mxu0 %v303
    %600 = vmatprep.subr.mxu0 %v302
    %601 = vmatpush1.msra.mxu0 %v301
    %602 = vmatprep.subr.mxu0 %v300
    %603 = vmatpush1.msra.mxu0 %v299
    %604 = vmatprep.subr.mxu0 %v298
    %605 = vmatpush1.msra.mxu0 %v297
    %606 = vmatprep.subr.mxu0 %v296
    %607 = vmatpush1.msra.mxu0 %v295
    %608 = vmatprep.subr.mxu0 %v294
    %609 = vmatpush1.msra.mxu0 %v293
    %610 = vmatprep.subr.mxu0 %v292
    %611 = vmatpush1.msra.mxu0 %v291
    %612 = vmatprep.subr.mxu0 %v354
    %613 = vmatpush2.msra.mxu0 %v353
    %614 = vmatprep.subr.mxu0 %v352
    %615 = vmatpush2.msra.mxu0 %v351
    %616 = vmatprep.subr.mxu0 %v350
    %617 = vmatpush2.msra.mxu0 %v349
    %618 = vmatprep.subr.mxu0 %v348
    %619 = vmatpush2.msra.mxu0 %v347
    %620 = vmatprep.subr.mxu0 %v346
    %621 = vmatpush2.msra.mxu0 %v345
    %622 = vmatprep.subr.mxu0 %v344
    %623 = vmatpush2.msra.mxu0 %v343
    %624 = vmatprep.subr.mxu0 %v342
    %625 = vmatpush2.msra.mxu0 %v341
    %626 = vmatprep.subr.mxu0 %v340
    %627 = vmatpush2.msra.mxu0 %v339
    %628 = vmatprep.subr.mxu0 %v338
    %629 = vmatpush2.msra.mxu0 %v337
    %630 = vmatprep.subr.mxu0 %v336
    %631 = vmatpush2.msra.mxu0 %v335
    %632 = vmatprep.subr.mxu0 %v334
    %633 = vmatpush2.msra.mxu0 %v333
    %634 = vmatprep.subr.mxu0 %v332
    %635 = vmatpush2.msra.mxu0 %v331
    %636 = vmatprep.subr.mxu0 %v330
    %637 = vmatpush2.msra.mxu0 %v329
    %638 = vmatprep.subr.mxu0 %v328
    %639 = vmatpush2.msra.mxu0 %v327
    %640 = vmatprep.subr.mxu0 %v326
    %641 = vmatpush2.msra.mxu0 %v325
    %642 = vmatprep.subr.mxu0 %v324
    %643 = vmatpush2.msra.mxu0 %v323
    %644 = vmatprep.mubr.f32.mxu0 %v98
    %645 = vmatmul.mubr.f32.gmra.mxu0 %v97
    %v646 = vpop.f32.mrf.mxu0
    %v647 = vadd.f32 %v576, %v646
    %v648 = vpop.f32.mrf.mxu0
    %v649 = vadd.f32 %v578, %v648
    %650 = vdwg.mxu0
    %vm651 = vcmp.ge.f32.partialorder %v647, 0.0
    %vm652 = vcmp.ge.f32.partialorder %v649, 0.0
    %v653 = vsel %vm651, 1, 0
    %v654 = vsel %vm652, 1, 0
    %v655 = vcvt.s32.f32 %v653
    %v656 = vcvt.s32.f32 %v654
    %v657 = vmul.f32 %v655, %v647
    %v658 = vmul.f32 %v656, %v649
    %v659 = vld [vmem:[#allocation7] sm:$0xff]
    %v660 = vld [vmem:[#allocation7 + $0x8] sm:$0xff]
    %v661 = vld [vmem:[#allocation7 + $0x10] sm:$0xff]
    %v662 = vld [vmem:[#allocation7 + $0x18] sm:$0xff]
    %v663 = vld [vmem:[#allocation7 + $0x20] sm:$0xff]
    %v664 = vld [vmem:[#allocation7 + $0x28] sm:$0xff]
    %v665 = vld [vmem:[#allocation7 + $0x30] sm:$0xff]
    %v666 = vld [vmem:[#allocation7 + $0x38] sm:$0xff]
    %v667 = vld [vmem:[#allocation7 + $0x40] sm:$0xff]
    %v668 = vld [vmem:[#allocation7 + $0x48] sm:$0xff]
    %v669 = vld [vmem:[#allocation7 + $0x50] sm:$0xff]
    %v670 = vld [vmem:[#allocation7 + $0x58] sm:$0xff]
    %v671 = vld [vmem:[#allocation7 + $0x60] sm:$0xff]
    %v672 = vld [vmem:[#allocation7 + $0x68] sm:$0xff]
    %v673 = vld [vmem:[#allocation7 + $0x70] sm:$0xff]
    %v674 = vld [vmem:[#allocation7 + $0x78] sm:$0xff]
    %v675 = vld [vmem:[#allocation7 + $0x80] sm:$0xff]
    %v676 = vld [vmem:[#allocation7 + $0x88] sm:$0xff]
    %v677 = vld [vmem:[#allocation7 + $0x90] sm:$0xff]
    %v678 = vld [vmem:[#allocation7 + $0x98] sm:$0xff]
    %v679 = vld [vmem:[#allocation7 + $0xa0] sm:$0xff]
    %v680 = vld [vmem:[#allocation7 + $0xa8] sm:$0xff]
    %v681 = vld [vmem:[#allocation7 + $0xb0] sm:$0xff]
    %v682 = vld [vmem:[#allocation7 + $0xb8] sm:$0xff]
    %v683 = vld [vmem:[#allocation7 + $0xc0] sm:$0xff]
    %v684 = vld [vmem:[#allocation7 + $0xc8] sm:$0xff]
    %v685 = vld [vmem:[#allocation7 + $0xd0] sm:$0xff]
    %v686 = vld [vmem:[#allocation7 + $0xd8] sm:$0xff]
    %v687 = vld [vmem:[#allocation7 + $0xe0] sm:$0xff]
    %v688 = vld [vmem:[#allocation7 + $0xe8] sm:$0xff]
    %v689 = vld [vmem:[#allocation7 + $0xf0] sm:$0xff]
    %v690 = vld [vmem:[#allocation7 + $0xf8] sm:$0xff]
    %v691 = vld [vmem:[#allocation7 + $0x100] sm:$0xff]
    %v692 = vld [vmem:[#allocation7 + $0x108] sm:$0xff]
    %v693 = vld [vmem:[#allocation7 + $0x110] sm:$0xff]
    %v694 = vld [vmem:[#allocation7 + $0x118] sm:$0xff]
    %v695 = vld [vmem:[#allocation7 + $0x120] sm:$0xff]
    %v696 = vld [vmem:[#allocation7 + $0x128] sm:$0xff]
    %v697 = vld [vmem:[#allocation7 + $0x130] sm:$0xff]
    %v698 = vld [vmem:[#allocation7 + $0x138] sm:$0xff]
    %v699 = vld [vmem:[#allocation7 + $0x140] sm:$0xff]
    %v700 = vld [vmem:[#allocation7 + $0x148] sm:$0xff]
    %v701 = vld [vmem:[#allocation7 + $0x150] sm:$0xff]
    %v702 = vld [vmem:[#allocation7 + $0x158] sm:$0xff]
    %v703 = vld [vmem:[#allocation7 + $0x160] sm:$0xff]
    %v704 = vld [vmem:[#allocation7 + $0x168] sm:$0xff]
    %v705 = vld [vmem:[#allocation7 + $0x170] sm:$0xff]
    %v706 = vld [vmem:[#allocation7 + $0x178] sm:$0xff]
    %v707 = vld [vmem:[#allocation7 + $0x180] sm:$0xff]
    %v708 = vld [vmem:[#allocation7 + $0x188] sm:$0xff]
    %v709 = vld [vmem:[#allocation7 + $0x190] sm:$0xff]
    %v710 = vld [vmem:[#allocation7 + $0x198] sm:$0xff]
    %v711 = vld [vmem:[#allocation7 + $0x1a0] sm:$0xff]
    %v712 = vld [vmem:[#allocation7 + $0x1a8] sm:$0xff]
    %v713 = vld [vmem:[#allocation7 + $0x1b0] sm:$0xff]
    %v714 = vld [vmem:[#allocation7 + $0x1b8] sm:$0xff]
    %v715 = vld [vmem:[#allocation7 + $0x1c0] sm:$0xff]
    %v716 = vld [vmem:[#allocation7 + $0x1c8] sm:$0xff]
    %v717 = vld [vmem:[#allocation7 + $0x1d0] sm:$0xff]
    %v718 = vld [vmem:[#allocation7 + $0x1d8] sm:$0xff]
    %v719 = vld [vmem:[#allocation7 + $0x1e0] sm:$0xff]
    %v720 = vld [vmem:[#allocation7 + $0x1e8] sm:$0xff]
    %v721 = vld [vmem:[#allocation7 + $0x1f0] sm:$0xff]
    %v722 = vld [vmem:[#allocation7 + $0x1f8] sm:$0xff]
    %v723 = vld [vmem:[#allocation8] sm:$0x3]
    %v725 = vlaneseq
    %v726 = vshrl.u32 %v725, 7
    %v727 = vsub.s32 0, %v726
    %v728 = vrot.slane %v723, %v727
    %v729 = vlaneseq
    %v730 = vshrl.u32 %v729, 7
    %v731 = vsub.s32 1, %v730
    %v732 = vrot.slane %v723, %v731
    %735 = vmatprep.subr.mxu0 %v690
    %736 = vmatpush1.msra.mxu0 %v689
    %737 = vmatprep.subr.mxu0 %v688
    %738 = vmatpush1.msra.mxu0 %v687
    %739 = vmatprep.subr.mxu0 %v686
    %740 = vmatpush1.msra.mxu0 %v685
    %741 = vmatprep.subr.mxu0 %v684
    %742 = vmatpush1.msra.mxu0 %v683
    %743 = vmatprep.subr.mxu0 %v682
    %744 = vmatpush1.msra.mxu0 %v681
    %745 = vmatprep.subr.mxu0 %v680
    %746 = vmatpush1.msra.mxu0 %v679
    %747 = vmatprep.subr.mxu0 %v678
    %748 = vmatpush1.msra.mxu0 %v677
    %749 = vmatprep.subr.mxu0 %v676
    %750 = vmatpush1.msra.mxu0 %v675
    %751 = vmatprep.subr.mxu0 %v674
    %752 = vmatpush1.msra.mxu0 %v673
    %753 = vmatprep.subr.mxu0 %v672
    %754 = vmatpush1.msra.mxu0 %v671
    %755 = vmatprep.subr.mxu0 %v670
    %756 = vmatpush1.msra.mxu0 %v669
    %757 = vmatprep.subr.mxu0 %v668
    %758 = vmatpush1.msra.mxu0 %v667
    %759 = vmatprep.subr.mxu0 %v666
    %760 = vmatpush1.msra.mxu0 %v665
    %761 = vmatprep.subr.mxu0 %v664
    %762 = vmatpush1.msra.mxu0 %v663
    %763 = vmatprep.subr.mxu0 %v662
    %764 = vmatpush1.msra.mxu0 %v661
    %765 = vmatprep.subr.mxu0 %v660
    %766 = vmatpush1.msra.mxu0 %v659
    %767 = vmatprep.subr.mxu0 %v722
    %768 = vmatpush2.msra.mxu0 %v721
    %769 = vmatprep.subr.mxu0 %v720
    %770 = vmatpush2.msra.mxu0 %v719
    %771 = vmatprep.subr.mxu0 %v718
    %772 = vmatpush2.msra.mxu0 %v717
    %773 = vmatprep.subr.mxu0 %v716
    %774 = vmatpush2.msra.mxu0 %v715
    %775 = vmatprep.subr.mxu0 %v714
    %776 = vmatpush2.msra.mxu0 %v713
    %777 = vmatprep.subr.mxu0 %v712
    %778 = vmatpush2.msra.mxu0 %v711
    %779 = vmatprep.subr.mxu0 %v710
    %780 = vmatpush2.msra.mxu0 %v709
    %781 = vmatprep.subr.mxu0 %v708
    %782 = vmatpush2.msra.mxu0 %v707
    %783 = vmatprep.subr.mxu0 %v706
    %784 = vmatpush2.msra.mxu0 %v705
    %785 = vmatprep.subr.mxu0 %v704
    %786 = vmatpush2.msra.mxu0 %v703
    %787 = vmatprep.subr.mxu0 %v702
    %788 = vmatpush2.msra.mxu0 %v701
    %789 = vmatprep.subr.mxu0 %v700
    %790 = vmatpush2.msra.mxu0 %v699
    %791 = vmatprep.subr.mxu0 %v698
    %792 = vmatpush2.msra.mxu0 %v697
    %793 = vmatprep.subr.mxu0 %v696
    %794 = vmatpush2.msra.mxu0 %v695
    %795 = vmatprep.subr.mxu0 %v694
    %796 = vmatpush2.msra.mxu0 %v693
    %797 = vmatprep.subr.mxu0 %v692
    %798 = vmatpush2.msra.mxu0 %v691
    %799 = vmatprep.mubr.f32.mxu0 %v658
    %800 = vmatmul.mubr.f32.gmra.mxu0 %v657
    %v801 = vpop.f32.mrf.mxu0
    %v802 = vadd.f32 %v728, %v801
    %v803 = vpop.f32.mrf.mxu0
    %v804 = vadd.f32 %v732, %v803
    %805 = vdwg.mxu0
    %vm806 = vcmp.ge.f32.partialorder %v802, 0.0
    %vm807 = vcmp.ge.f32.partialorder %v804, 0.0
    %v808 = vsel %vm806, 1, 0
    %v809 = vsel %vm807, 1, 0
    %v810 = vcvt.s32.f32 %v808
    %v811 = vcvt.s32.f32 %v809
    %v812 = vmul.f32 %v810, %v802
    %v813 = vmul.f32 %v811, %v804
    %v814 = vld [vmem:[#allocation10] sm:$0xff]
    %v815 = vld [vmem:[#allocation10 + $0x8] sm:$0xff]
    %v816 = vld [vmem:[#allocation10 + $0x10] sm:$0xff]
    %v817 = vld [vmem:[#allocation10 + $0x18] sm:$0xff]
    %v818 = vld [vmem:[#allocation10 + $0x20] sm:$0xff]
    %v819 = vld [vmem:[#allocation10 + $0x28] sm:$0xff]
    %v820 = vld [vmem:[#allocation10 + $0x30] sm:$0xff]
    %v821 = vld [vmem:[#allocation10 + $0x38] sm:$0xff]
    %v822 = vld [vmem:[#allocation10 + $0x40] sm:$0xff]
    %v823 = vld [vmem:[#allocation10 + $0x48] sm:$0xff]
    %v824 = vld [vmem:[#allocation10 + $0x50] sm:$0xff]
    %v825 = vld [vmem:[#allocation10 + $0x58] sm:$0xff]
    %v826 = vld [vmem:[#allocation10 + $0x60] sm:$0xff]
    %v827 = vld [vmem:[#allocation10 + $0x68] sm:$0xff]
    %v828 = vld [vmem:[#allocation10 + $0x70] sm:$0xff]
    %v829 = vld [vmem:[#allocation10 + $0x78] sm:$0xff]
    %v830 = vld [vmem:[#allocation10 + $0x80] sm:$0xff]
    %v831 = vld [vmem:[#allocation10 + $0x88] sm:$0xff]
    %v832 = vld [vmem:[#allocation10 + $0x90] sm:$0xff]
    %v833 = vld [vmem:[#allocation10 + $0x98] sm:$0xff]
    %v834 = vld [vmem:[#allocation10 + $0xa0] sm:$0xff]
    %v835 = vld [vmem:[#allocation10 + $0xa8] sm:$0xff]
    %v836 = vld [vmem:[#allocation10 + $0xb0] sm:$0xff]
    %v837 = vld [vmem:[#allocation10 + $0xb8] sm:$0xff]
    %v838 = vld [vmem:[#allocation10 + $0xc0] sm:$0xff]
    %v839 = vld [vmem:[#allocation10 + $0xc8] sm:$0xff]
    %v840 = vld [vmem:[#allocation10 + $0xd0] sm:$0xff]
    %v841 = vld [vmem:[#allocation10 + $0xd8] sm:$0xff]
    %v842 = vld [vmem:[#allocation10 + $0xe0] sm:$0xff]
    %v843 = vld [vmem:[#allocation10 + $0xe8] sm:$0xff]
    %v844 = vld [vmem:[#allocation10 + $0xf0] sm:$0xff]
    %v845 = vld [vmem:[#allocation10 + $0xf8] sm:$0xff]
    %v846 = vld [vmem:[#allocation10 + $0x100] sm:$0xff]
    %v847 = vld [vmem:[#allocation10 + $0x108] sm:$0xff]
    %v848 = vld [vmem:[#allocation10 + $0x110] sm:$0xff]
    %v849 = vld [vmem:[#allocation10 + $0x118] sm:$0xff]
    %v850 = vld [vmem:[#allocation10 + $0x120] sm:$0xff]
    %v851 = vld [vmem:[#allocation10 + $0x128] sm:$0xff]
    %v852 = vld [vmem:[#allocation10 + $0x130] sm:$0xff]
    %v853 = vld [vmem:[#allocation10 + $0x138] sm:$0xff]
    %v854 = vld [vmem:[#allocation10 + $0x140] sm:$0xff]
    %v855 = vld [vmem:[#allocation10 + $0x148] sm:$0xff]
    %v856 = vld [vmem:[#allocation10 + $0x150] sm:$0xff]
    %v857 = vld [vmem:[#allocation10 + $0x158] sm:$0xff]
    %v858 = vld [vmem:[#allocation10 + $0x160] sm:$0xff]
    %v859 = vld [vmem:[#allocation10 + $0x168] sm:$0xff]
    %v860 = vld [vmem:[#allocation10 + $0x170] sm:$0xff]
    %v861 = vld [vmem:[#allocation10 + $0x178] sm:$0xff]
    %v862 = vld [vmem:[#allocation10 + $0x180] sm:$0xff]
    %v863 = vld [vmem:[#allocation10 + $0x188] sm:$0xff]
    %v864 = vld [vmem:[#allocation10 + $0x190] sm:$0xff]
    %v865 = vld [vmem:[#allocation10 + $0x198] sm:$0xff]
    %v866 = vld [vmem:[#allocation10 + $0x1a0] sm:$0xff]
    %v867 = vld [vmem:[#allocation10 + $0x1a8] sm:$0xff]
    %v868 = vld [vmem:[#allocation10 + $0x1b0] sm:$0xff]
    %v869 = vld [vmem:[#allocation10 + $0x1b8] sm:$0xff]
    %v870 = vld [vmem:[#allocation10 + $0x1c0] sm:$0xff]
    %v871 = vld [vmem:[#allocation10 + $0x1c8] sm:$0xff]
    %v872 = vld [vmem:[#allocation10 + $0x1d0] sm:$0xff]
    %v873 = vld [vmem:[#allocation10 + $0x1d8] sm:$0xff]
    %v874 = vld [vmem:[#allocation10 + $0x1e0] sm:$0xff]
    %v875 = vld [vmem:[#allocation10 + $0x1e8] sm:$0xff]
    %v876 = vld [vmem:[#allocation10 + $0x1f0] sm:$0xff]
    %v877 = vld [vmem:[#allocation10 + $0x1f8] sm:$0xff]
    %v878 = vld [vmem:[#allocation10 + $0x200] sm:$0xff]
    %v879 = vld [vmem:[#allocation10 + $0x208] sm:$0xff]
    %v880 = vld [vmem:[#allocation10 + $0x210] sm:$0xff]
    %v881 = vld [vmem:[#allocation10 + $0x218] sm:$0xff]
    %v882 = vld [vmem:[#allocation10 + $0x220] sm:$0xff]
    %v883 = vld [vmem:[#allocation10 + $0x228] sm:$0xff]
    %v884 = vld [vmem:[#allocation10 + $0x230] sm:$0xff]
    %v885 = vld [vmem:[#allocation10 + $0x238] sm:$0xff]
    %v886 = vld [vmem:[#allocation10 + $0x240] sm:$0xff]
    %v887 = vld [vmem:[#allocation10 + $0x248] sm:$0xff]
    %v888 = vld [vmem:[#allocation10 + $0x250] sm:$0xff]
    %v889 = vld [vmem:[#allocation10 + $0x258] sm:$0xff]
    %v890 = vld [vmem:[#allocation10 + $0x260] sm:$0xff]
    %v891 = vld [vmem:[#allocation10 + $0x268] sm:$0xff]
    %v892 = vld [vmem:[#allocation10 + $0x270] sm:$0xff]
    %v893 = vld [vmem:[#allocation10 + $0x278] sm:$0xff]
    %v894 = vld [vmem:[#allocation10 + $0x280] sm:$0xff]
    %v895 = vld [vmem:[#allocation10 + $0x288] sm:$0xff]
    %v896 = vld [vmem:[#allocation10 + $0x290] sm:$0xff]
    %v897 = vld [vmem:[#allocation10 + $0x298] sm:$0xff]
    %v898 = vld [vmem:[#allocation10 + $0x2a0] sm:$0xff]
    %v899 = vld [vmem:[#allocation10 + $0x2a8] sm:$0xff]
    %v900 = vld [vmem:[#allocation10 + $0x2b0] sm:$0xff]
    %v901 = vld [vmem:[#allocation10 + $0x2b8] sm:$0xff]
    %v902 = vld [vmem:[#allocation10 + $0x2c0] sm:$0xff]
    %v903 = vld [vmem:[#allocation10 + $0x2c8] sm:$0xff]
    %v904 = vld [vmem:[#allocation10 + $0x2d0] sm:$0xff]
    %v905 = vld [vmem:[#allocation10 + $0x2d8] sm:$0xff]
    %v906 = vld [vmem:[#allocation10 + $0x2e0] sm:$0xff]
    %v907 = vld [vmem:[#allocation10 + $0x2e8] sm:$0xff]
    %v908 = vld [vmem:[#allocation10 + $0x2f0] sm:$0xff]
    %v909 = vld [vmem:[#allocation10 + $0x2f8] sm:$0xff]
    %v910 = vld [vmem:[#allocation10 + $0x300] sm:$0xff]
    %v911 = vld [vmem:[#allocation10 + $0x308] sm:$0xff]
    %v912 = vld [vmem:[#allocation10 + $0x310] sm:$0xff]
    %v913 = vld [vmem:[#allocation10 + $0x318] sm:$0xff]
    %v914 = vld [vmem:[#allocation10 + $0x320] sm:$0xff]
    %v915 = vld [vmem:[#allocation10 + $0x328] sm:$0xff]
    %v916 = vld [vmem:[#allocation10 + $0x330] sm:$0xff]
    %v917 = vld [vmem:[#allocation10 + $0x338] sm:$0xff]
    %v918 = vld [vmem:[#allocation10 + $0x340] sm:$0xff]
    %v919 = vld [vmem:[#allocation10 + $0x348] sm:$0xff]
    %v920 = vld [vmem:[#allocation10 + $0x350] sm:$0xff]
    %v921 = vld [vmem:[#allocation10 + $0x358] sm:$0xff]
    %v922 = vld [vmem:[#allocation10 + $0x360] sm:$0xff]
    %v923 = vld [vmem:[#allocation10 + $0x368] sm:$0xff]
    %v924 = vld [vmem:[#allocation10 + $0x370] sm:$0xff]
    %v925 = vld [vmem:[#allocation10 + $0x378] sm:$0xff]
    %v926 = vld [vmem:[#allocation10 + $0x380] sm:$0xff]
    %v927 = vld [vmem:[#allocation10 + $0x388] sm:$0xff]
    %v928 = vld [vmem:[#allocation10 + $0x390] sm:$0xff]
    %v929 = vld [vmem:[#allocation10 + $0x398] sm:$0xff]
    %v930 = vld [vmem:[#allocation10 + $0x3a0] sm:$0xff]
    %v931 = vld [vmem:[#allocation10 + $0x3a8] sm:$0xff]
    %v932 = vld [vmem:[#allocation10 + $0x3b0] sm:$0xff]
    %v933 = vld [vmem:[#allocation10 + $0x3b8] sm:$0xff]
    %v934 = vld [vmem:[#allocation10 + $0x3c0] sm:$0xff]
    %v935 = vld [vmem:[#allocation10 + $0x3c8] sm:$0xff]
    %v936 = vld [vmem:[#allocation10 + $0x3d0] sm:$0xff]
    %v937 = vld [vmem:[#allocation10 + $0x3d8] sm:$0xff]
    %v938 = vld [vmem:[#allocation10 + $0x3e0] sm:$0xff]
    %v939 = vld [vmem:[#allocation10 + $0x3e8] sm:$0xff]
    %v940 = vld [vmem:[#allocation10 + $0x3f0] sm:$0xff]
    %v941 = vld [vmem:[#allocation10 + $0x3f8] sm:$0xff]
    %v942 = vld [vmem:[#allocation10 + $0x400] sm:$0xff]
    %v943 = vld [vmem:[#allocation10 + $0x408] sm:$0xff]
    %v944 = vld [vmem:[#allocation10 + $0x410] sm:$0xff]
    %v945 = vld [vmem:[#allocation10 + $0x418] sm:$0xff]
    %v946 = vld [vmem:[#allocation10 + $0x420] sm:$0xff]
    %v947 = vld [vmem:[#allocation10 + $0x428] sm:$0xff]
    %v948 = vld [vmem:[#allocation10 + $0x430] sm:$0xff]
    %v949 = vld [vmem:[#allocation10 + $0x438] sm:$0xff]
    %v950 = vld [vmem:[#allocation10 + $0x440] sm:$0xff]
    %v951 = vld [vmem:[#allocation10 + $0x448] sm:$0xff]
    %v952 = vld [vmem:[#allocation10 + $0x450] sm:$0xff]
    %v953 = vld [vmem:[#allocation10 + $0x458] sm:$0xff]
    %v954 = vld [vmem:[#allocation10 + $0x460] sm:$0xff]
    %v955 = vld [vmem:[#allocation10 + $0x468] sm:$0xff]
    %v956 = vld [vmem:[#allocation10 + $0x470] sm:$0xff]
    %v957 = vld [vmem:[#allocation10 + $0x478] sm:$0xff]
    %v958 = vld [vmem:[#allocation10 + $0x480] sm:$0xff]
    %v959 = vld [vmem:[#allocation10 + $0x488] sm:$0xff]
    %v960 = vld [vmem:[#allocation10 + $0x490] sm:$0xff]
    %v961 = vld [vmem:[#allocation10 + $0x498] sm:$0xff]
    %v962 = vld [vmem:[#allocation10 + $0x4a0] sm:$0xff]
    %v963 = vld [vmem:[#allocation10 + $0x4a8] sm:$0xff]
    %v964 = vld [vmem:[#allocation10 + $0x4b0] sm:$0xff]
    %v965 = vld [vmem:[#allocation10 + $0x4b8] sm:$0xff]
    %v966 = vld [vmem:[#allocation10 + $0x4c0] sm:$0xff]
    %v967 = vld [vmem:[#allocation10 + $0x4c8] sm:$0xff]
    %v968 = vld [vmem:[#allocation10 + $0x4d0] sm:$0xff]
    %v969 = vld [vmem:[#allocation10 + $0x4d8] sm:$0xff]
    %v970 = vld [vmem:[#allocation10 + $0x4e0] sm:$0xff]
    %v971 = vld [vmem:[#allocation10 + $0x4e8] sm:$0xff]
    %v972 = vld [vmem:[#allocation10 + $0x4f0] sm:$0xff]
    %v973 = vld [vmem:[#allocation10 + $0x4f8] sm:$0xff]
    %v974 = vld [vmem:[#allocation10 + $0x500] sm:$0xff]
    %v975 = vld [vmem:[#allocation10 + $0x508] sm:$0xff]
    %v976 = vld [vmem:[#allocation10 + $0x510] sm:$0xff]
    %v977 = vld [vmem:[#allocation10 + $0x518] sm:$0xff]
    %v978 = vld [vmem:[#allocation10 + $0x520] sm:$0xff]
    %v979 = vld [vmem:[#allocation10 + $0x528] sm:$0xff]
    %v980 = vld [vmem:[#allocation10 + $0x530] sm:$0xff]
    %v981 = vld [vmem:[#allocation10 + $0x538] sm:$0xff]
    %v982 = vld [vmem:[#allocation10 + $0x540] sm:$0xff]
    %v983 = vld [vmem:[#allocation10 + $0x548] sm:$0xff]
    %v984 = vld [vmem:[#allocation10 + $0x550] sm:$0xff]
    %v985 = vld [vmem:[#allocation10 + $0x558] sm:$0xff]
    %v986 = vld [vmem:[#allocation10 + $0x560] sm:$0xff]
    %v987 = vld [vmem:[#allocation10 + $0x568] sm:$0xff]
    %v988 = vld [vmem:[#allocation10 + $0x570] sm:$0xff]
    %v989 = vld [vmem:[#allocation10 + $0x578] sm:$0xff]
    %v990 = vld [vmem:[#allocation10 + $0x580] sm:$0xff]
    %v991 = vld [vmem:[#allocation10 + $0x588] sm:$0xff]
    %v992 = vld [vmem:[#allocation10 + $0x590] sm:$0xff]
    %v993 = vld [vmem:[#allocation10 + $0x598] sm:$0xff]
    %v994 = vld [vmem:[#allocation10 + $0x5a0] sm:$0xff]
    %v995 = vld [vmem:[#allocation10 + $0x5a8] sm:$0xff]
    %v996 = vld [vmem:[#allocation10 + $0x5b0] sm:$0xff]
    %v997 = vld [vmem:[#allocation10 + $0x5b8] sm:$0xff]
    %v998 = vld [vmem:[#allocation10 + $0x5c0] sm:$0xff]
    %v999 = vld [vmem:[#allocation10 + $0x5c8] sm:$0xff]
    %v1000 = vld [vmem:[#allocation10 + $0x5d0] sm:$0xff]
    %v1001 = vld [vmem:[#allocation10 + $0x5d8] sm:$0xff]
    %v1002 = vld [vmem:[#allocation10 + $0x5e0] sm:$0xff]
    %v1003 = vld [vmem:[#allocation10 + $0x5e8] sm:$0xff]
    %v1004 = vld [vmem:[#allocation10 + $0x5f0] sm:$0xff]
    %v1005 = vld [vmem:[#allocation10 + $0x5f8] sm:$0xff]
    %v1006 = vld [vmem:[#allocation10 + $0x600] sm:$0xff]
    %v1007 = vld [vmem:[#allocation10 + $0x608] sm:$0xff]
    %v1008 = vld [vmem:[#allocation10 + $0x610] sm:$0xff]
    %v1009 = vld [vmem:[#allocation10 + $0x618] sm:$0xff]
    %v1010 = vld [vmem:[#allocation10 + $0x620] sm:$0xff]
    %v1011 = vld [vmem:[#allocation10 + $0x628] sm:$0xff]
    %v1012 = vld [vmem:[#allocation10 + $0x630] sm:$0xff]
    %v1013 = vld [vmem:[#allocation10 + $0x638] sm:$0xff]
    %v1014 = vld [vmem:[#allocation10 + $0x640] sm:$0xff]
    %v1015 = vld [vmem:[#allocation10 + $0x648] sm:$0xff]
    %v1016 = vld [vmem:[#allocation10 + $0x650] sm:$0xff]
    %v1017 = vld [vmem:[#allocation10 + $0x658] sm:$0xff]
    %v1018 = vld [vmem:[#allocation10 + $0x660] sm:$0xff]
    %v1019 = vld [vmem:[#allocation10 + $0x668] sm:$0xff]
    %v1020 = vld [vmem:[#allocation10 + $0x670] sm:$0xff]
    %v1021 = vld [vmem:[#allocation10 + $0x678] sm:$0xff]
    %v1022 = vld [vmem:[#allocation10 + $0x680] sm:$0xff]
    %v1023 = vld [vmem:[#allocation10 + $0x688] sm:$0xff]
    %v1024 = vld [vmem:[#allocation10 + $0x690] sm:$0xff]
    %v1025 = vld [vmem:[#allocation10 + $0x698] sm:$0xff]
    %v1026 = vld [vmem:[#allocation10 + $0x6a0] sm:$0xff]
    %v1027 = vld [vmem:[#allocation10 + $0x6a8] sm:$0xff]
    %v1028 = vld [vmem:[#allocation10 + $0x6b0] sm:$0xff]
    %v1029 = vld [vmem:[#allocation10 + $0x6b8] sm:$0xff]
    %v1030 = vld [vmem:[#allocation10 + $0x6c0] sm:$0xff]
    %v1031 = vld [vmem:[#allocation10 + $0x6c8] sm:$0xff]
    %v1032 = vld [vmem:[#allocation10 + $0x6d0] sm:$0xff]
    %v1033 = vld [vmem:[#allocation10 + $0x6d8] sm:$0xff]
    %v1034 = vld [vmem:[#allocation10 + $0x6e0] sm:$0xff]
    %v1035 = vld [vmem:[#allocation10 + $0x6e8] sm:$0xff]
    %v1036 = vld [vmem:[#allocation10 + $0x6f0] sm:$0xff]
    %v1037 = vld [vmem:[#allocation10 + $0x6f8] sm:$0xff]
    %v1038 = vld [vmem:[#allocation10 + $0x700] sm:$0xff]
    %v1039 = vld [vmem:[#allocation10 + $0x708] sm:$0xff]
    %v1040 = vld [vmem:[#allocation10 + $0x710] sm:$0xff]
    %v1041 = vld [vmem:[#allocation10 + $0x718] sm:$0xff]
    %v1042 = vld [vmem:[#allocation10 + $0x720] sm:$0xff]
    %v1043 = vld [vmem:[#allocation10 + $0x728] sm:$0xff]
    %v1044 = vld [vmem:[#allocation10 + $0x730] sm:$0xff]
    %v1045 = vld [vmem:[#allocation10 + $0x738] sm:$0xff]
    %v1046 = vld [vmem:[#allocation10 + $0x740] sm:$0xff]
    %v1047 = vld [vmem:[#allocation10 + $0x748] sm:$0xff]
    %v1048 = vld [vmem:[#allocation10 + $0x750] sm:$0xff]
    %v1049 = vld [vmem:[#allocation10 + $0x758] sm:$0xff]
    %v1050 = vld [vmem:[#allocation10 + $0x760] sm:$0xff]
    %v1051 = vld [vmem:[#allocation10 + $0x768] sm:$0xff]
    %v1052 = vld [vmem:[#allocation10 + $0x770] sm:$0xff]
    %v1053 = vld [vmem:[#allocation10 + $0x778] sm:$0xff]
    %v1054 = vld [vmem:[#allocation10 + $0x780] sm:$0xff]
    %v1055 = vld [vmem:[#allocation10 + $0x788] sm:$0xff]
    %v1056 = vld [vmem:[#allocation10 + $0x790] sm:$0xff]
    %v1057 = vld [vmem:[#allocation10 + $0x798] sm:$0xff]
    %v1058 = vld [vmem:[#allocation10 + $0x7a0] sm:$0xff]
    %v1059 = vld [vmem:[#allocation10 + $0x7a8] sm:$0xff]
    %v1060 = vld [vmem:[#allocation10 + $0x7b0] sm:$0xff]
    %v1061 = vld [vmem:[#allocation10 + $0x7b8] sm:$0xff]
    %v1062 = vld [vmem:[#allocation10 + $0x7c0] sm:$0xff]
    %v1063 = vld [vmem:[#allocation10 + $0x7c8] sm:$0xff]
    %v1064 = vld [vmem:[#allocation10 + $0x7d0] sm:$0xff]
    %v1065 = vld [vmem:[#allocation10 + $0x7d8] sm:$0xff]
    %v1066 = vld [vmem:[#allocation10 + $0x7e0] sm:$0xff]
    %v1067 = vld [vmem:[#allocation10 + $0x7e8] sm:$0xff]
    %v1068 = vld [vmem:[#allocation10 + $0x7f0] sm:$0xff]
    %v1069 = vld [vmem:[#allocation10 + $0x7f8] sm:$0xff]
    %v1070 = vld [vmem:[%s6] sm:$0xff]
    %v1072 = vlaneseq
    %v1073 = vshrl.u32 %v1072, 7
    %v1074 = vsub.s32 0, %v1073
    %v1075 = vrot.slane %v1070, %v1074
    %v1076 = vlaneseq
    %v1077 = vshrl.u32 %v1076, 7
    %v1078 = vsub.s32 1, %v1077
    %v1079 = vrot.slane %v1070, %v1078
    %v1080 = vlaneseq
    %v1081 = vshrl.u32 %v1080, 7
    %v1082 = vsub.s32 2, %v1081
    %v1083 = vrot.slane %v1070, %v1082
    %v1084 = vlaneseq
    %v1085 = vshrl.u32 %v1084, 7
    %v1086 = vsub.s32 3, %v1085
    %v1087 = vrot.slane %v1070, %v1086
    %v1088 = vlaneseq
    %v1089 = vshrl.u32 %v1088, 7
    %v1090 = vsub.s32 4, %v1089
    %v1091 = vrot.slane %v1070, %v1090
    %v1092 = vlaneseq
    %v1093 = vshrl.u32 %v1092, 7
    %v1094 = vsub.s32 5, %v1093
    %v1095 = vrot.slane %v1070, %v1094
    %v1096 = vlaneseq
    %v1097 = vshrl.u32 %v1096, 7
    %v1098 = vsub.s32 6, %v1097
    %v1099 = vrot.slane %v1070, %v1098
    %v1100 = vlaneseq
    %v1101 = vshrl.u32 %v1100, 7
    %v1102 = vsub.s32 7, %v1101
    %v1103 = vrot.slane %v1070, %v1102
    %1112 = vmatprep.subr.mxu0 %v935
    %1113 = vmatpush1.msra.mxu0 %v934
    %1114 = vmatprep.subr.mxu0 %v927
    %1115 = vmatpush1.msra.mxu0 %v926
    %1116 = vmatprep.subr.mxu0 %v919
    %1117 = vmatpush1.msra.mxu0 %v918
    %1118 = vmatprep.subr.mxu0 %v911
    %1119 = vmatpush1.msra.mxu0 %v910
    %1120 = vmatprep.subr.mxu0 %v903
    %1121 = vmatpush1.msra.mxu0 %v902
    %1122 = vmatprep.subr.mxu0 %v895
    %1123 = vmatpush1.msra.mxu0 %v894
    %1124 = vmatprep.subr.mxu0 %v887
    %1125 = vmatpush1.msra.mxu0 %v886
    %1126 = vmatprep.subr.mxu0 %v879
    %1127 = vmatpush1.msra.mxu0 %v878
    %1128 = vmatprep.subr.mxu0 %v871
    %1129 = vmatpush1.msra.mxu0 %v870
    %1130 = vmatprep.subr.mxu0 %v863
    %1131 = vmatpush1.msra.mxu0 %v862
    %1132 = vmatprep.subr.mxu0 %v855
    %1133 = vmatpush1.msra.mxu0 %v854
    %1134 = vmatprep.subr.mxu0 %v847
    %1135 = vmatpush1.msra.mxu0 %v846
    %1136 = vmatprep.subr.mxu0 %v839
    %1137 = vmatpush1.msra.mxu0 %v838
    %1138 = vmatprep.subr.mxu0 %v831
    %1139 = vmatpush1.msra.mxu0 %v830
    %1140 = vmatprep.subr.mxu0 %v823
    %1141 = vmatpush1.msra.mxu0 %v822
    %1142 = vmatprep.subr.mxu0 %v815
    %1143 = vmatpush1.msra.mxu0 %v814
    %1144 = vmatprep.subr.mxu0 %v1063
    %1145 = vmatpush2.msra.mxu0 %v1062
    %1146 = vmatprep.subr.mxu0 %v1055
    %1147 = vmatpush2.msra.mxu0 %v1054
    %1148 = vmatprep.subr.mxu0 %v1047
    %1149 = vmatpush2.msra.mxu0 %v1046
    %1150 = vmatprep.subr.mxu0 %v1039
    %1151 = vmatpush2.msra.mxu0 %v1038
    %1152 = vmatprep.subr.mxu0 %v1031
    %1153 = vmatpush2.msra.mxu0 %v1030
    %1154 = vmatprep.subr.mxu0 %v1023
    %1155 = vmatpush2.msra.mxu0 %v1022
    %1156 = vmatprep.subr.mxu0 %v1015
    %1157 = vmatpush2.msra.mxu0 %v1014
    %1158 = vmatprep.subr.mxu0 %v1007
    %1159 = vmatpush2.msra.mxu0 %v1006
    %1160 = vmatprep.subr.mxu0 %v999
    %1161 = vmatpush2.msra.mxu0 %v998
    %1162 = vmatprep.subr.mxu0 %v991
    %1163 = vmatpush2.msra.mxu0 %v990
    %1164 = vmatprep.subr.mxu0 %v983
    %1165 = vmatpush2.msra.mxu0 %v982
    %1166 = vmatprep.subr.mxu0 %v975
    %1167 = vmatpush2.msra.mxu0 %v974
    %1168 = vmatprep.subr.mxu0 %v967
    %1169 = vmatpush2.msra.mxu0 %v966
    %1170 = vmatprep.subr.mxu0 %v959
    %1171 = vmatpush2.msra.mxu0 %v958
    %1172 = vmatprep.subr.mxu0 %v951
    %1173 = vmatpush2.msra.mxu0 %v950
    %1174 = vmatprep.subr.mxu0 %v943
    %1175 = vmatpush2.msra.mxu0 %v942
    %1176 = vmatprep.mubr.f32.mxu0 %v813
    %1177 = vmatmul.mubr.f32.gmra.mxu0 %v812
    %v1178 = vpop.f32.mrf.mxu0
    %v1179 = vadd.f32 %v1075, %v1178
    %v1180 = vpop.f32.mrf.mxu0
    %v1181 = vadd.f32 %v1079, %v1180
    %1182 = vdwg.mxu0
    %1183 = vmatprep.subr.mxu0 %v937
    %1184 = vmatpush1.msra.mxu0 %v936
    %1185 = vmatprep.subr.mxu0 %v929
    %1186 = vmatpush1.msra.mxu0 %v928
    %1187 = vmatprep.subr.mxu0 %v921
    %1188 = vmatpush1.msra.mxu0 %v920
    %1189 = vmatprep.subr.mxu0 %v913
    %1190 = vmatpush1.msra.mxu0 %v912
    %1191 = vmatprep.subr.mxu0 %v905
    %1192 = vmatpush1.msra.mxu0 %v904
    %1193 = vmatprep.subr.mxu0 %v897
    %1194 = vmatpush1.msra.mxu0 %v896
    %1195 = vmatprep.subr.mxu0 %v889
    %1196 = vmatpush1.msra.mxu0 %v888
    %1197 = vmatprep.subr.mxu0 %v881
    %1198 = vmatpush1.msra.mxu0 %v880
    %1199 = vmatprep.subr.mxu0 %v873
    %1200 = vmatpush1.msra.mxu0 %v872
    %1201 = vmatprep.subr.mxu0 %v865
    %1202 = vmatpush1.msra.mxu0 %v864
    %1203 = vmatprep.subr.mxu0 %v857
    %1204 = vmatpush1.msra.mxu0 %v856
    %1205 = vmatprep.subr.mxu0 %v849
    %1206 = vmatpush1.msra.mxu0 %v848
    %1207 = vmatprep.subr.mxu0 %v841
    %1208 = vmatpush1.msra.mxu0 %v840
    %1209 = vmatprep.subr.mxu0 %v833
    %1210 = vmatpush1.msra.mxu0 %v832
    %1211 = vmatprep.subr.mxu0 %v825
    %1212 = vmatpush1.msra.mxu0 %v824
    %1213 = vmatprep.subr.mxu0 %v817
    %1214 = vmatpush1.msra.mxu0 %v816
    %1215 = vmatprep.subr.mxu0 %v1065
    %1216 = vmatpush2.msra.mxu0 %v1064
    %1217 = vmatprep.subr.mxu0 %v1057
    %1218 = vmatpush2.msra.mxu0 %v1056
    %1219 = vmatprep.subr.mxu0 %v1049
    %1220 = vmatpush2.msra.mxu0 %v1048
    %1221 = vmatprep.subr.mxu0 %v1041
    %1222 = vmatpush2.msra.mxu0 %v1040
    %1223 = vmatprep.subr.mxu0 %v1033
    %1224 = vmatpush2.msra.mxu0 %v1032
    %1225 = vmatprep.subr.mxu0 %v1025
    %1226 = vmatpush2.msra.mxu0 %v1024
    %1227 = vmatprep.subr.mxu0 %v1017
    %1228 = vmatpush2.msra.mxu0 %v1016
    %1229 = vmatprep.subr.mxu0 %v1009
    %1230 = vmatpush2.msra.mxu0 %v1008
    %1231 = vmatprep.subr.mxu0 %v1001
    %1232 = vmatpush2.msra.mxu0 %v1000
    %1233 = vmatprep.subr.mxu0 %v993
    %1234 = vmatpush2.msra.mxu0 %v992
    %1235 = vmatprep.subr.mxu0 %v985
    %1236 = vmatpush2.msra.mxu0 %v984
    %1237 = vmatprep.subr.mxu0 %v977
    %1238 = vmatpush2.msra.mxu0 %v976
    %1239 = vmatprep.subr.mxu0 %v969
    %1240 = vmatpush2.msra.mxu0 %v968
    %1241 = vmatprep.subr.mxu0 %v961
    %1242 = vmatpush2.msra.mxu0 %v960
    %1243 = vmatprep.subr.mxu0 %v953
    %1244 = vmatpush2.msra.mxu0 %v952
    %1245 = vmatprep.subr.mxu0 %v945
    %1246 = vmatpush2.msra.mxu0 %v944
    %1247 = vmatprep.mubr.f32.mxu0 %v813
    %1248 = vmatmul.mubr.f32.gmra.mxu0 %v812
    %v1249 = vpop.f32.mrf.mxu0
    %v1250 = vadd.f32 %v1083, %v1249
    %v1251 = vpop.f32.mrf.mxu0
    %v1252 = vadd.f32 %v1087, %v1251
    %1253 = vdwg.mxu0
    %1254 = vmatprep.subr.mxu0 %v939
    %1255 = vmatpush1.msra.mxu0 %v938
    %1256 = vmatprep.subr.mxu0 %v931
    %1257 = vmatpush1.msra.mxu0 %v930
    %1258 = vmatprep.subr.mxu0 %v923
    %1259 = vmatpush1.msra.mxu0 %v922
    %1260 = vmatprep.subr.mxu0 %v915
    %1261 = vmatpush1.msra.mxu0 %v914
    %1262 = vmatprep.subr.mxu0 %v907
    %1263 = vmatpush1.msra.mxu0 %v906
    %1264 = vmatprep.subr.mxu0 %v899
    %1265 = vmatpush1.msra.mxu0 %v898
    %1266 = vmatprep.subr.mxu0 %v891
    %1267 = vmatpush1.msra.mxu0 %v890
    %1268 = vmatprep.subr.mxu0 %v883
    %1269 = vmatpush1.msra.mxu0 %v882
    %1270 = vmatprep.subr.mxu0 %v875
    %1271 = vmatpush1.msra.mxu0 %v874
    %1272 = vmatprep.subr.mxu0 %v867
    %1273 = vmatpush1.msra.mxu0 %v866
    %1274 = vmatprep.subr.mxu0 %v859
    %1275 = vmatpush1.msra.mxu0 %v858
    %1276 = vmatprep.subr.mxu0 %v851
    %1277 = vmatpush1.msra.mxu0 %v850
    %1278 = vmatprep.subr.mxu0 %v843
    %1279 = vmatpush1.msra.mxu0 %v842
    %1280 = vmatprep.subr.mxu0 %v835
    %1281 = vmatpush1.msra.mxu0 %v834
    %1282 = vmatprep.subr.mxu0 %v827
    %1283 = vmatpush1.msra.mxu0 %v826
    %1284 = vmatprep.subr.mxu0 %v819
    %1285 = vmatpush1.msra.mxu0 %v818
    %1286 = vmatprep.subr.mxu0 %v1067
    %1287 = vmatpush2.msra.mxu0 %v1066
    %1288 = vmatprep.subr.mxu0 %v1059
    %1289 = vmatpush2.msra.mxu0 %v1058
    %1290 = vmatprep.subr.mxu0 %v1051
    %1291 = vmatpush2.msra.mxu0 %v1050
    %1292 = vmatprep.subr.mxu0 %v1043
    %1293 = vmatpush2.msra.mxu0 %v1042
    %1294 = vmatprep.subr.mxu0 %v1035
    %1295 = vmatpush2.msra.mxu0 %v1034
    %1296 = vmatprep.subr.mxu0 %v1027
    %1297 = vmatpush2.msra.mxu0 %v1026
    %1298 = vmatprep.subr.mxu0 %v1019
    %1299 = vmatpush2.msra.mxu0 %v1018
    %1300 = vmatprep.subr.mxu0 %v1011
    %1301 = vmatpush2.msra.mxu0 %v1010
    %1302 = vmatprep.subr.mxu0 %v1003
    %1303 = vmatpush2.msra.mxu0 %v1002
    %1304 = vmatprep.subr.mxu0 %v995
    %1305 = vmatpush2.msra.mxu0 %v994
    %1306 = vmatprep.subr.mxu0 %v987
    %1307 = vmatpush2.msra.mxu0 %v986
    %1308 = vmatprep.subr.mxu0 %v979
    %1309 = vmatpush2.msra.mxu0 %v978
    %1310 = vmatprep.subr.mxu0 %v971
    %1311 = vmatpush2.msra.mxu0 %v970
    %1312 = vmatprep.subr.mxu0 %v963
    %1313 = vmatpush2.msra.mxu0 %v962
    %1314 = vmatprep.subr.mxu0 %v955
    %1315 = vmatpush2.msra.mxu0 %v954
    %1316 = vmatprep.subr.mxu0 %v947
    %1317 = vmatpush2.msra.mxu0 %v946
    %1318 = vmatprep.mubr.f32.mxu0 %v813
    %1319 = vmatmul.mubr.f32.gmra.mxu0 %v812
    %v1320 = vpop.f32.mrf.mxu0
    %v1321 = vadd.f32 %v1091, %v1320
    %v1322 = vpop.f32.mrf.mxu0
    %v1323 = vadd.f32 %v1095, %v1322
    %1324 = vdwg.mxu0
    %1325 = vmatprep.subr.mxu0 %v941
    %1326 = vmatpush1.msra.mxu0 %v940
    %1327 = vmatprep.subr.mxu0 %v933
    %1328 = vmatpush1.msra.mxu0 %v932
    %1329 = vmatprep.subr.mxu0 %v925
    %1330 = vmatpush1.msra.mxu0 %v924
    %1331 = vmatprep.subr.mxu0 %v917
    %1332 = vmatpush1.msra.mxu0 %v916
    %1333 = vmatprep.subr.mxu0 %v909
    %1334 = vmatpush1.msra.mxu0 %v908
    %1335 = vmatprep.subr.mxu0 %v901
    %1336 = vmatpush1.msra.mxu0 %v900
    %1337 = vmatprep.subr.mxu0 %v893
    %1338 = vmatpush1.msra.mxu0 %v892
    %1339 = vmatprep.subr.mxu0 %v885
    %1340 = vmatpush1.msra.mxu0 %v884
    %1341 = vmatprep.subr.mxu0 %v877
    %1342 = vmatpush1.msra.mxu0 %v876
    %1343 = vmatprep.subr.mxu0 %v869
    %1344 = vmatpush1.msra.mxu0 %v868
    %1345 = vmatprep.subr.mxu0 %v861
    %1346 = vmatpush1.msra.mxu0 %v860
    %1347 = vmatprep.subr.mxu0 %v853
    %1348 = vmatpush1.msra.mxu0 %v852
    %1349 = vmatprep.subr.mxu0 %v845
    %1350 = vmatpush1.msra.mxu0 %v844
    %1351 = vmatprep.subr.mxu0 %v837
    %1352 = vmatpush1.msra.mxu0 %v836
    %1353 = vmatprep.subr.mxu0 %v829
    %1354 = vmatpush1.msra.mxu0 %v828
    %1355 = vmatprep.subr.mxu0 %v821
    %1356 = vmatpush1.msra.mxu0 %v820
    %1357 = vmatprep.subr.mxu0 %v1069
    %1358 = vmatpush2.msra.mxu0 %v1068
    %1359 = vmatprep.subr.mxu0 %v1061
    %1360 = vmatpush2.msra.mxu0 %v1060
    %1361 = vmatprep.subr.mxu0 %v1053
    %1362 = vmatpush2.msra.mxu0 %v1052
    %1363 = vmatprep.subr.mxu0 %v1045
    %1364 = vmatpush2.msra.mxu0 %v1044
    %1365 = vmatprep.subr.mxu0 %v1037
    %1366 = vmatpush2.msra.mxu0 %v1036
    %1367 = vmatprep.subr.mxu0 %v1029
    %1368 = vmatpush2.msra.mxu0 %v1028
    %1369 = vmatprep.subr.mxu0 %v1021
    %1370 = vmatpush2.msra.mxu0 %v1020
    %1371 = vmatprep.subr.mxu0 %v1013
    %1372 = vmatpush2.msra.mxu0 %v1012
    %1373 = vmatprep.subr.mxu0 %v1005
    %1374 = vmatpush2.msra.mxu0 %v1004
    %1375 = vmatprep.subr.mxu0 %v997
    %1376 = vmatpush2.msra.mxu0 %v996
    %1377 = vmatprep.subr.mxu0 %v989
    %1378 = vmatpush2.msra.mxu0 %v988
    %1379 = vmatprep.subr.mxu0 %v981
    %1380 = vmatpush2.msra.mxu0 %v980
    %1381 = vmatprep.subr.mxu0 %v973
    %1382 = vmatpush2.msra.mxu0 %v972
    %1383 = vmatprep.subr.mxu0 %v965
    %1384 = vmatpush2.msra.mxu0 %v964
    %1385 = vmatprep.subr.mxu0 %v957
    %1386 = vmatpush2.msra.mxu0 %v956
    %1387 = vmatprep.subr.mxu0 %v949
    %1388 = vmatpush2.msra.mxu0 %v948
    %1389 = vmatprep.mubr.f32.mxu0 %v813
    %1390 = vmatmul.mubr.f32.gmra.mxu0 %v812
    %v1391 = vpop.f32.mrf.mxu0
    %v1392 = vadd.f32 %v1099, %v1391
    %v1393 = vpop.f32.mrf.mxu0
    %v1394 = vadd.f32 %v1103, %v1393
    %1395 = vdwg.mxu0
    %1396 = vst [vmem:[#allocation11] sm:$0xff] %v1179
    %1397 = vst [vmem:[#allocation11 + $0x8] sm:$0xff] %v1181
    %1398 = vst [vmem:[#allocation11 + $0x10] sm:$0xff] %v1250
    %1399 = vst [vmem:[#allocation11 + $0x18] sm:$0xff] %v1252
    %1400 = vst [vmem:[#allocation11 + $0x20] sm:$0xff] %v1321
    %1401 = vst [vmem:[#allocation11 + $0x28] sm:$0xff] %v1323
    %1402 = vst [vmem:[#allocation11 + $0x30] sm:$0xff] %v1392
    %1403 = vst [vmem:[#allocation11 + $0x38] sm:$0xff] %v1394
    // Predicated region
    $region50: #{tpu_custom_call.1} parent=1 // pred_check
      _
    $region51: #{tpu_custom_call.1} parent=1 // pred_check_branch
      %1405 = sbr.rel (0) target = $region53
    $region52: #{tpu_custom_call.1} parent=1 // pred_region
      %s1407 = ssub.s32 1024, 1024
      %1408 = vsyncadd [#allocation4], %s1407
      %s1410 = sshll.u32 [#allocation11], 4
      %s1411 = int_to_ptr.vmem [resolvable:$true] %s1410
      %1413 = dma.vmem_to_hbm [thread:$0]  %s1411, 1024, %s7, [#allocation4]
    $region53: #{tpu_custom_call.1} parent=1 // pred_fallthru
      _
    // Predicated region
    $region54: #{tpu_custom_call.1} parent=1 // pred_check
      _
    $region55: #{tpu_custom_call.1} parent=1 // pred_check_branch
      %1415 = sbr.rel (0) target = $region57
    $region56: #{tpu_custom_call.1} parent=1 // pred_region
      %1416 = dma.done [#allocation4], 1024
    $region57: #{tpu_custom_call.1} parent=1 // pred_fallthru
      _
    %1417 = vsyncpa [#allocation3], 1
    %1418 = vsyncpa [#allocation6], 1
    %1419 = vsyncpa [#allocation9], 1
    %1420 = vsyncpa [#allocation4], 1

</llo_original>
